<compile_context>
chip_gen: v7x
topology: tpu7x:2x2x1
jax: 0.10.0
libtpu: 0.0.40
codegen_flags: <defaults>
</compile_context>

<pallas_src>
import functools

import jax
import jax.numpy as jnp
from jax.experimental import pallas as pl
from jax.experimental.pallas import tpu as pltpu


def _round_up(n, m):
    return ((n + m - 1) // m) * m


def _choose_block_b(batch, max_block=512):
    """Batch tile: large, multiple of 8, grid>=2 when the batch allows (v7x)."""
    b8 = _round_up(max(batch, 8), 8)
    if b8 <= max_block:
        if b8 >= 16 and b8 % 16 == 0:
            return b8 // 2  # 2 grid steps -> shards across v7x's 2 TensorCores
        return b8
    return max_block


def _ln_relu(x, gamma, beta, inv_n, eps=1e-5):
    """Fused single-pass LayerNorm (+ affine) followed by ReLU.

    Sums run over the padded lane width, but padded lanes of x are exactly 0,
    so dividing by the true feature count (inv_n = 1/true_dim) gives the same
    mean/var as torch.nn.LayerNorm (biased variance). gamma/beta are 0 in the
    padded lanes, so padded outputs stay 0.
    """
    s1 = jnp.sum(x, axis=-1, keepdims=True)
    s2 = jnp.sum(x * x, axis=-1, keepdims=True)
    mean = s1 * inv_n
    var = jnp.maximum(s2 * inv_n - mean * mean, 0.0)
    inv = jax.lax.rsqrt(var + eps)
    y = (x - mean) * inv * gamma + beta
    return jnp.maximum(y, 0.0)


def actor_kernel(x_ref, w1_ref, p1_ref, w2_ref, p2_ref, w3_ref, b3_ref, o_ref,
                 *, inv_n1, inv_n2):
    x = x_ref[...]  # already f32

    # FC1 + LayerNorm + ReLU   (p1 rows: 0=bias, 1=gamma, 2=beta)
    h = jnp.dot(x, w1_ref[...], preferred_element_type=jnp.float32)
    h = h + p1_ref[0:1, :]
    h = _ln_relu(h, p1_ref[1:2, :], p1_ref[2:3, :], inv_n1)

    # FC2 + LayerNorm + ReLU
    h = jnp.dot(h, w2_ref[...], preferred_element_type=jnp.float32)
    h = h + p2_ref[0:1, :]
    h = _ln_relu(h, p2_ref[1:2, :], p2_ref[2:3, :], inv_n2)

    # FC3 + Tanh (lane-dense padded output; wrapper slices to action_dim)
    h = jnp.dot(h, w3_ref[...], preferred_element_type=jnp.float32) + b3_ref[...]
    o_ref[...] = jnp.tanh(h).astype(o_ref.dtype)


@functools.partial(jax.jit, static_argnames=("dims", "max_block_b"))
def actor_forward(state, params, *, dims, max_block_b=512):
    """state: (B, state_dim) float32. Returns (B, action_dim) float32."""
    state_dim, fc1_dim, fc2_dim, action_dim = dims
    w1, p1, w2, p2, w3, b3 = params
    fc1_p, fc2_p, act_p = w1.shape[1], w2.shape[1], w3.shape[1]

    B = state.shape[0]
    block_b = _choose_block_b(B, max_block_b)
    B_pad = _round_up(B, block_b)
    if B_pad != B:
        state = jnp.pad(state, ((0, B_pad - B), (0, 0)))

    grid = (B_pad // block_b,)
    const = lambda i: (0, 0)

    in_specs = [
        pl.BlockSpec((block_b, state_dim), lambda i: (i, 0)),  # x tile
        pl.BlockSpec((state_dim, fc1_p), const),               # w1
        pl.BlockSpec((3, fc1_p), const),                       # [b1; g1; be1]
        pl.BlockSpec((fc1_p, fc2_p), const),                   # w2
        pl.BlockSpec((3, fc2_p), const),                       # [b2; g2; be2]
        pl.BlockSpec((fc2_p, act_p), const),                   # w3
        pl.BlockSpec((1, act_p), const),                       # b3
    ]
    out_specs = pl.BlockSpec((block_b, act_p), lambda i: (i, 0))

    out = pl.pallas_call(
        functools.partial(actor_kernel,
                          inv_n1=1.0 / float(fc1_dim),
                          inv_n2=1.0 / float(fc2_dim)),
        out_shape=jax.ShapeDtypeStruct((B_pad, act_p), jnp.float32),
        grid=grid,
        in_specs=in_specs,
        out_specs=out_specs,
        compiler_params=pltpu.CompilerParams(
            dimension_semantics=("parallel",)),
    )(state, w1, p1, w2, p2, w3, b3)

    return out[:B, :action_dim]


def init_params(key, state_dim, fc1_dim, fc2_dim, action_dim):
    """Synthetic parameters, pre-padded to lane-dense (128) feature widths.

    Shapes (padded):
      w1 (state_dim, fc1_p)   p1 (3, fc1_p)  rows = [bias, gamma, beta]
      w2 (fc1_p,     fc2_p)   p2 (3, fc2_p)
      w3 (fc2_p,     act_p)   b3 (1, act_p)
    Padded lanes/rows are zero; LN gamma is zero in padded lanes so padded
    activations are exactly zero through the whole network.
    """
    fc1_p = _round_up(fc1_dim, 128)
    fc2_p = _round_up(fc2_dim, 128)
    act_p = _round_up(action_dim, 128)

    ks = jax.random.split(key, 3)

    def lin(k, fan_in, fan_out, in_pad, out_pad):
        bound = 1.0 / (float(fan_in) ** 0.5)
        kw, kb = jax.random.split(k)
        w = jax.random.uniform(kw, (fan_in, fan_out), jnp.float32, -bound, bound)
        b = jax.random.uniform(kb, (1, fan_out), jnp.float32, -bound, bound)
        w = jnp.pad(w, ((0, in_pad - fan_in), (0, out_pad - fan_out)))
        b = jnp.pad(b, ((0, 0), (0, out_pad - fan_out)))
        return w, b

    w1, b1 = lin(ks[0], state_dim, fc1_dim, state_dim, fc1_p)
    w2, b2 = lin(ks[1], fc1_dim, fc2_dim, fc1_p, fc2_p)
    w3, b3 = lin(ks[2], fc2_dim, action_dim, fc2_p, act_p)

    def ln_params(true_dim, pad_dim):
        gamma = jnp.pad(jnp.ones((1, true_dim), jnp.float32),
                        ((0, 0), (0, pad_dim - true_dim)))
        beta = jnp.zeros((1, pad_dim), jnp.float32)
        return gamma, beta

    g1, be1 = ln_params(fc1_dim, fc1_p)
    g2, be2 = ln_params(fc2_dim, fc2_p)

    p1 = jnp.concatenate([b1, g1, be1], axis=0)  # (3, fc1_p)
    p2 = jnp.concatenate([b2, g2, be2], axis=0)  # (3, fc2_p)

    params = (w1, p1, w2, p2, w3, b3)
    dims = (state_dim, fc1_dim, fc2_dim, action_dim)
    return params, dims


def actor_reference(state, params, dims):
    """Pure-JAX reference (two-pass LayerNorm, unpadded math)."""
    state_dim, fc1_dim, fc2_dim, action_dim = dims
    w1, p1, w2, p2, w3, b3 = params

    def ln(x, g, b, eps=1e-5):
        m = jnp.mean(x, axis=-1, keepdims=True)
        v = jnp.mean((x - m) ** 2, axis=-1, keepdims=True)
        return (x - m) * jax.lax.rsqrt(v + eps) * g + b

    h = state @ w1[:, :fc1_dim] + p1[0, :fc1_dim]
    h = jnp.maximum(ln(h, p1[1, :fc1_dim], p1[2, :fc1_dim]), 0.0)
    h = h @ w2[:fc1_dim, :fc2_dim] + p2[0, :fc2_dim]
    h = jnp.maximum(ln(h, p2[1, :fc2_dim], p2[2, :fc2_dim]), 0.0)
    h = h @ w3[:fc2_dim, :action_dim] + b3[0, :action_dim]
    return jnp.tanh(h)


if __name__ == "__main__":
    # Typical DDPG-style config: non-128 hidden dims exercise the padding path.
    state_dim, fc1_dim, fc2_dim, action_dim = 16, 400, 300, 8
    batch = 64  # -> block_b=32, grid=(2,): both v7x TensorCores busy

    key = jax.random.PRNGKey(0)
    k_params, k_state = jax.random.split(key)
    params, dims = init_params(k_params, state_dim, fc1_dim, fc2_dim, action_dim)
    state = jax.random.normal(k_state, (batch, state_dim), jnp.float32)

    out = actor_forward(state, params, dims=dims)
    out = jax.block_until_ready(out)

    ref = actor_reference(state, params, dims)

    assert out.shape == (batch, action_dim)
    assert bool(jnp.all(jnp.isfinite(out)))
    assert bool(jnp.all(jnp.abs(out) <= 1.0))          # tanh range
    assert bool(jnp.allclose(out, ref, atol=2e-3, rtol=2e-3))
    print("KERNEL_OK")
</pallas_src>

<mosaic_0001>
module attributes {stable_mosaic.version = 11 : i64} {
  func.func @actor_kernel(%arg0: i32, %arg1: memref<32x16xf32, #tpu.memory_space<vmem>>, %arg2: memref<16x512xf32, #tpu.memory_space<vmem>>, %arg3: memref<3x512xf32, #tpu.memory_space<vmem>>, %arg4: memref<512x384xf32, #tpu.memory_space<vmem>>, %arg5: memref<3x384xf32, #tpu.memory_space<vmem>>, %arg6: memref<384x128xf32, #tpu.memory_space<vmem>>, %arg7: memref<1x128xf32, #tpu.memory_space<vmem>>, %arg8: memref<32x128xf32, #tpu.memory_space<vmem>>) attributes {dimension_semantics = [#tpu.dimension_semantics<parallel>], iteration_bounds = array<i64: 2>, scalar_prefetch = 0 : i64, scratch_operands = 0 : i64, tpu.core_type = #tpu.core_type<tc>, window_params = [{transform_indices = @transform_0, window_bounds = array<i64: 32, 16>}, {pipeline_mode = #tpu.pipeline_mode<synchronous>, transform_indices = @transform_1, window_bounds = array<i64: 16, 512>}, {pipeline_mode = #tpu.pipeline_mode<synchronous>, transform_indices = @transform_2, window_bounds = array<i64: 3, 512>}, {pipeline_mode = #tpu.pipeline_mode<synchronous>, transform_indices = @transform_3, window_bounds = array<i64: 512, 384>}, {pipeline_mode = #tpu.pipeline_mode<synchronous>, transform_indices = @transform_4, window_bounds = array<i64: 3, 384>}, {pipeline_mode = #tpu.pipeline_mode<synchronous>, transform_indices = @transform_5, window_bounds = array<i64: 384, 128>}, {pipeline_mode = #tpu.pipeline_mode<synchronous>, transform_indices = @transform_6, window_bounds = array<i64: 1, 128>}, {transform_indices = @transform_7, window_bounds = array<i64: 32, 128>}]} {
    %c0 = arith.constant 0 : index
    %c0_0 = arith.constant 0 : index
    %0 = vector.load %arg1[%c0, %c0_0] : memref<32x16xf32, #tpu.memory_space<vmem>>, vector<32x16xf32>
    %c0_1 = arith.constant 0 : index
    %c0_2 = arith.constant 0 : index
    %1 = vector.load %arg2[%c0_1, %c0_2] : memref<16x512xf32, #tpu.memory_space<vmem>>, vector<16x512xf32>
    %cst = arith.constant dense<0.000000e+00> : vector<32x512xf32>
    %2 = tpu.matmul %0, %1, %cst {dimension_numbers = #tpu.dot_dimension_numbers<[1], [0], [0], [1], [0, 0, 1, 1], [], []>} : vector<32x16xf32>, vector<16x512xf32>, vector<32x512xf32> -> vector<32x512xf32>
    %c0_3 = arith.constant 0 : index
    %c0_4 = arith.constant 0 : index
    %3 = vector.load %arg3[%c0_3, %c0_4] : memref<3x512xf32, #tpu.memory_space<vmem>>, vector<1x512xf32>
    %4 = vector.broadcast %3 : vector<1x512xf32> to vector<32x512xf32>
    %5 = arith.addf %2, %4 : vector<32x512xf32>
    %c1 = arith.constant 1 : index
    %c0_5 = arith.constant 0 : index
    %6 = vector.load %arg3[%c1, %c0_5] : memref<3x512xf32, #tpu.memory_space<vmem>>, vector<1x512xf32>
    %c2 = arith.constant 2 : index
    %c0_6 = arith.constant 0 : index
    %7 = vector.load %arg3[%c2, %c0_6] : memref<3x512xf32, #tpu.memory_space<vmem>>, vector<1x512xf32>
    %cst_7 = arith.constant dense<0.000000e+00> : vector<32xf32>
    %8 = vector.multi_reduction <add>, %5, %cst_7 [1] : vector<32x512xf32> to vector<32xf32>
    %9 = vector.shape_cast %8 : vector<32xf32> to vector<32x1xf32>
    %10 = arith.mulf %5, %5 : vector<32x512xf32>
    %cst_8 = arith.constant dense<0.000000e+00> : vector<32xf32>
    %11 = vector.multi_reduction <add>, %10, %cst_8 [1] : vector<32x512xf32> to vector<32xf32>
    %12 = vector.shape_cast %11 : vector<32xf32> to vector<32x1xf32>
    %cst_9 = arith.constant 2.500000e-03 : f32
    %13 = vector.broadcast %cst_9 : f32 to vector<32x1xf32>
    %14 = arith.mulf %9, %13 : vector<32x1xf32>
    %cst_10 = arith.constant 2.500000e-03 : f32
    %15 = vector.broadcast %cst_10 : f32 to vector<32x1xf32>
    %16 = arith.mulf %12, %15 : vector<32x1xf32>
    %17 = arith.mulf %14, %14 : vector<32x1xf32>
    %18 = arith.subf %16, %17 : vector<32x1xf32>
    %cst_11 = arith.constant 0.000000e+00 : f32
    %19 = vector.broadcast %cst_11 : f32 to vector<32x1xf32>
    %20 = arith.maximumf %18, %19 : vector<32x1xf32>
    %cst_12 = arith.constant 9.99999974E-6 : f32
    %21 = vector.broadcast %cst_12 : f32 to vector<32x1xf32>
    %22 = arith.addf %20, %21 : vector<32x1xf32>
    %23 = math.rsqrt %22 : vector<32x1xf32>
    %24 = vector.broadcast %14 : vector<32x1xf32> to vector<32x512xf32>
    %25 = arith.subf %5, %24 : vector<32x512xf32>
    %26 = vector.broadcast %23 : vector<32x1xf32> to vector<32x512xf32>
    %27 = arith.mulf %25, %26 : vector<32x512xf32>
    %28 = vector.broadcast %6 : vector<1x512xf32> to vector<32x512xf32>
    %29 = arith.mulf %27, %28 : vector<32x512xf32>
    %30 = vector.broadcast %7 : vector<1x512xf32> to vector<32x512xf32>
    %31 = arith.addf %29, %30 : vector<32x512xf32>
    %cst_13 = arith.constant 0.000000e+00 : f32
    %32 = vector.broadcast %cst_13 : f32 to vector<32x512xf32>
    %33 = arith.maximumf %31, %32 : vector<32x512xf32>
    %c0_14 = arith.constant 0 : index
    %c0_15 = arith.constant 0 : index
    %34 = vector.load %arg4[%c0_14, %c0_15] : memref<512x384xf32, #tpu.memory_space<vmem>>, vector<512x384xf32>
    %cst_16 = arith.constant dense<0.000000e+00> : vector<32x384xf32>
    %35 = tpu.matmul %33, %34, %cst_16 {dimension_numbers = #tpu.dot_dimension_numbers<[1], [0], [0], [1], [0, 0, 1, 1], [], []>} : vector<32x512xf32>, vector<512x384xf32>, vector<32x384xf32> -> vector<32x384xf32>
    %c0_17 = arith.constant 0 : index
    %c0_18 = arith.constant 0 : index
    %36 = vector.load %arg5[%c0_17, %c0_18] : memref<3x384xf32, #tpu.memory_space<vmem>>, vector<1x384xf32>
    %37 = vector.broadcast %36 : vector<1x384xf32> to vector<32x384xf32>
    %38 = arith.addf %35, %37 : vector<32x384xf32>
    %c1_19 = arith.constant 1 : index
    %c0_20 = arith.constant 0 : index
    %39 = vector.load %arg5[%c1_19, %c0_20] : memref<3x384xf32, #tpu.memory_space<vmem>>, vector<1x384xf32>
    %c2_21 = arith.constant 2 : index
    %c0_22 = arith.constant 0 : index
    %40 = vector.load %arg5[%c2_21, %c0_22] : memref<3x384xf32, #tpu.memory_space<vmem>>, vector<1x384xf32>
    %cst_23 = arith.constant dense<0.000000e+00> : vector<32xf32>
    %41 = vector.multi_reduction <add>, %38, %cst_23 [1] : vector<32x384xf32> to vector<32xf32>
    %42 = vector.shape_cast %41 : vector<32xf32> to vector<32x1xf32>
    %43 = arith.mulf %38, %38 : vector<32x384xf32>
    %cst_24 = arith.constant dense<0.000000e+00> : vector<32xf32>
    %44 = vector.multi_reduction <add>, %43, %cst_24 [1] : vector<32x384xf32> to vector<32xf32>
    %45 = vector.shape_cast %44 : vector<32xf32> to vector<32x1xf32>
    %cst_25 = arith.constant 0.00333333341 : f32
    %46 = vector.broadcast %cst_25 : f32 to vector<32x1xf32>
    %47 = arith.mulf %42, %46 : vector<32x1xf32>
    %cst_26 = arith.constant 0.00333333341 : f32
    %48 = vector.broadcast %cst_26 : f32 to vector<32x1xf32>
    %49 = arith.mulf %45, %48 : vector<32x1xf32>
    %50 = arith.mulf %47, %47 : vector<32x1xf32>
    %51 = arith.subf %49, %50 : vector<32x1xf32>
    %cst_27 = arith.constant 0.000000e+00 : f32
    %52 = vector.broadcast %cst_27 : f32 to vector<32x1xf32>
    %53 = arith.maximumf %51, %52 : vector<32x1xf32>
    %cst_28 = arith.constant 9.99999974E-6 : f32
    %54 = vector.broadcast %cst_28 : f32 to vector<32x1xf32>
    %55 = arith.addf %53, %54 : vector<32x1xf32>
    %56 = math.rsqrt %55 : vector<32x1xf32>
    %57 = vector.broadcast %47 : vector<32x1xf32> to vector<32x384xf32>
    %58 = arith.subf %38, %57 : vector<32x384xf32>
    %59 = vector.broadcast %56 : vector<32x1xf32> to vector<32x384xf32>
    %60 = arith.mulf %58, %59 : vector<32x384xf32>
    %61 = vector.broadcast %39 : vector<1x384xf32> to vector<32x384xf32>
    %62 = arith.mulf %60, %61 : vector<32x384xf32>
    %63 = vector.broadcast %40 : vector<1x384xf32> to vector<32x384xf32>
    %64 = arith.addf %62, %63 : vector<32x384xf32>
    %cst_29 = arith.constant 0.000000e+00 : f32
    %65 = vector.broadcast %cst_29 : f32 to vector<32x384xf32>
    %66 = arith.maximumf %64, %65 : vector<32x384xf32>
    %c0_30 = arith.constant 0 : index
    %c0_31 = arith.constant 0 : index
    %67 = vector.load %arg6[%c0_30, %c0_31] : memref<384x128xf32, #tpu.memory_space<vmem>>, vector<384x128xf32>
    %cst_32 = arith.constant dense<0.000000e+00> : vector<32x128xf32>
    %68 = tpu.matmul %66, %67, %cst_32 {dimension_numbers = #tpu.dot_dimension_numbers<[1], [0], [0], [1], [0, 0, 1, 1], [], []>} : vector<32x384xf32>, vector<384x128xf32>, vector<32x128xf32> -> vector<32x128xf32>
    %c0_33 = arith.constant 0 : index
    %c0_34 = arith.constant 0 : index
    %69 = vector.load %arg7[%c0_33, %c0_34] : memref<1x128xf32, #tpu.memory_space<vmem>>, vector<1x128xf32>
    %70 = vector.broadcast %69 : vector<1x128xf32> to vector<32x128xf32>
    %71 = arith.addf %68, %70 : vector<32x128xf32>
    %72 = math.tanh %71 : vector<32x128xf32>
    %c0_35 = arith.constant 0 : index
    %c0_36 = arith.constant 0 : index
    %73 = vector.load %arg8[%c0_35, %c0_36] : memref<32x128xf32, #tpu.memory_space<vmem>>, vector<32x128xf32>
    tpu.vector_store %arg8[%c0_35, %c0_36], %72 {strides = array<i32>} : memref<32x128xf32, #tpu.memory_space<vmem>>, vector<32x128xf32>,
    return
  }
  func.func @transform_0(%arg0: i32) -> (i32, i32) {
    %c0_i32 = arith.constant 0 : i32
    %c0_i32_0 = arith.constant 0 : i32
    return %arg0, %c0_i32 : i32, i32
  }
  func.func @transform_1(%arg0: i32) -> (i32, i32) {
    %c0_i32 = arith.constant 0 : i32
    %c0_i32_0 = arith.constant 0 : i32
    %c0_i32_1 = arith.constant 0 : i32
    return %c0_i32, %c0_i32_0 : i32, i32
  }
  func.func @transform_2(%arg0: i32) -> (i32, i32) {
    %c0_i32 = arith.constant 0 : i32
    %c0_i32_0 = arith.constant 0 : i32
    %c0_i32_1 = arith.constant 0 : i32
    return %c0_i32, %c0_i32_0 : i32, i32
  }
  func.func @transform_3(%arg0: i32) -> (i32, i32) {
    %c0_i32 = arith.constant 0 : i32
    %c0_i32_0 = arith.constant 0 : i32
    %c0_i32_1 = arith.constant 0 : i32
    return %c0_i32, %c0_i32_0 : i32, i32
  }
  func.func @transform_4(%arg0: i32) -> (i32, i32) {
    %c0_i32 = arith.constant 0 : i32
    %c0_i32_0 = arith.constant 0 : i32
    %c0_i32_1 = arith.constant 0 : i32
    return %c0_i32, %c0_i32_0 : i32, i32
  }
  func.func @transform_5(%arg0: i32) -> (i32, i32) {
    %c0_i32 = arith.constant 0 : i32
    %c0_i32_0 = arith.constant 0 : i32
    %c0_i32_1 = arith.constant 0 : i32
    return %c0_i32, %c0_i32_0 : i32, i32
  }
  func.func @transform_6(%arg0: i32) -> (i32, i32) {
    %c0_i32 = arith.constant 0 : i32
    %c0_i32_0 = arith.constant 0 : i32
    %c0_i32_1 = arith.constant 0 : i32
    return %c0_i32, %c0_i32_0 : i32, i32
  }
  func.func @transform_7(%arg0: i32) -> (i32, i32) {
    %c0_i32 = arith.constant 0 : i32
    %c0_i32_0 = arith.constant 0 : i32
    return %arg0, %c0_i32 : i32, i32
  }
}

</mosaic_0001>

<llo_original>
// kernel: actor_forward.1
$region0: #{actor_forward.1}
  #allocation0 [shape = 'u32[]', space=smem, size = 0x4, offset = 0x4, fixed_abs, tag = 'smem constant byte address 0x4 - core index']
  #allocation1 [shape = 'u32[144,128]{1,0:T(1,128)}', space=vmem, size = 0x12000, scoped, tag = 'internal scratch']
  %s0 = inlined_call_operand.vmem [shape: f32[64,16], index: 0, kind: input, shape index: {}]
  %s1 = inlined_call_operand.vmem [shape: f32[16,512], index: 1, kind: input, shape index: {}]
  %s2 = inlined_call_operand.vmem [shape: f32[3,512], index: 2, kind: input, shape index: {}]
  %s3 = inlined_call_operand.hbm [shape: f32[512,384], index: 3, kind: input, shape index: {}]
  %s4 = inlined_call_operand.vmem [shape: f32[3,384], index: 4, kind: input, shape index: {}]
  %s5 = inlined_call_operand.hbm [shape: f32[384,128], index: 5, kind: input, shape index: {}]
  %s6 = inlined_call_operand.vmem [shape: f32[1,128], index: 6, kind: input, shape index: {}]
  %s7 = inlined_call_operand.vmem [shape: f32[64,128], index: 7, kind: output, shape index: {}]
  %s8 = sld [smem:[#allocation0]]
  $region69: #{actor_forward.1} parent=0
    _
  %s10 = ssub.s32 1, %s8
  %s11 = scalar_select 0, %s10, %s8
  $region1: #{actor_forward.1} parent=0
    #allocation2 [shape = 'u8[786432]{0}', space=vmem, size = 0xc0000, scoped, tag = 'input window, operand 3, single buffered']
    #allocation3 [shape = 's32[2]{0}', space=sflag, size = 0x8, scoped, tag = 'scoped memory for actor_forward.1']
    #allocation4 [shape = 'u8[196608]{0}', space=vmem, size = 0x30000, scoped, tag = 'input window, operand 5, single buffered']
    #allocation5 [shape = 's32[1]{0}', space=sflag, size = 0x4, scoped, tag = 'scoped memory for actor_forward.1']
    %12 = vsyncpa [#allocation3], 0
    %13 = vsyncpa [#allocation5], 0
    loop: start=0, step=1, limit=4
    $region2: #{actor_forward.1} parent=1 // loop_pre_header
      _
    $region3: #{actor_forward.1} parent=1 // loop_header
      %s15 = sphi 0, %s19
      %p16 = scmp.ge.s32.totalorder %s15, 4
      %s25 = sphi 0, %s27
      %s28 = sphi 0, %s25
      %s29 = sphi 0, %s28
      %s45 = sphi 0, %s29
      %s49 = sphi 0, %s49
      %s51 = sphi 0, %s49
      %s52 = sphi 0, %s51
      %s66 = sphi 0, %s52
      %s70 = sphi 0, %s70
      %s72 = sphi 0, %s70
      %s73 = sphi 0, %s72
      %s87 = sphi 0, %s73
      %s91 = sphi 0, %s91
      %s93 = sphi 0, %s91
      %s94 = sphi 0, %s93
      %s108 = sphi 0, %s94
      %s112 = sphi 0, %s112
      %s114 = sphi 0, %s112
      %s115 = sphi 0, %s114
      %s129 = sphi 0, %s115
      %s133 = sphi 0, %s133
      %s135 = sphi 0, %s133
      %s136 = sphi 0, %s135
      %s150 = sphi 0, %s136
      %s154 = sphi 0, %s154
      %s156 = sphi 0, %s154
      %s157 = sphi 0, %s156
      %s171 = sphi 0, %s157
      %s177 = sphi 0, %s179
      %s180 = sphi 0, %s177
      %s181 = sphi 0, %s180
      %s197 = sphi 0, %s181
    $region4: #{actor_forward.1} parent=1 // loop_header_branch
      %18 = sbr.rel (%p16) target = $region8
    $region5: #{actor_forward.1} parent=1 // loop_body
      %s20 = ssub.s32 %s15, 1
      %s21 = ssub.s32 %s15, 2
      %s22 = sadd.s32 %s15, 1
      %s23 = ssub.s32 %s15, %s22
      %p24 = scmp.eq.s32.totalorder %s23, 0
      %s26 = sadd.s32 %s25, 1
      %s27 = scalar_select %p24, %s25, %s26
      %p30 = pneg %p24
      %p31 = scmp.eq.s32.totalorder %s15, 1
      %p32 = por %p30, %p31
      %p33 = scmp.ne.s32.totalorder %s25, %s28
      %p34 = scmp.eq.s32.totalorder %s15, 0
      %p35 = por %p33, %p34
      %p36 = scmp.ne.s32.totalorder %s25, %s28
      %p37 = scmp.eq.s32.totalorder %s20, 1
      %p38 = por %p36, %p37
      %p39 = scmp.ne.s32.totalorder %s28, %s29
      %p40 = scmp.eq.s32.totalorder %s20, 0
      %p41 = por %p39, %p40
      %p42 = scmp.ne.s32.totalorder %s28, %s29
      %p43 = scmp.eq.s32.totalorder %s21, 1
      %p44 = por %p42, %p43
      %p46 = scmp.ne.s32.totalorder %s29, %s45
      %p47 = scmp.eq.s32.totalorder %s21, 0
      %p48 = por %p46, %p47
      %s50 = sadd.s32 %s49, 1
      %p53 = scmp.eq.s32.totalorder %s15, 1
      %p54 = scmp.ne.s32.totalorder %s49, %s51
      %p55 = scmp.eq.s32.totalorder %s15, 0
      %p56 = por %p54, %p55
      %p57 = scmp.ne.s32.totalorder %s49, %s51
      %p58 = scmp.eq.s32.totalorder %s20, 1
      %p59 = por %p57, %p58
      %p60 = scmp.ne.s32.totalorder %s51, %s52
      %p61 = scmp.eq.s32.totalorder %s20, 0
      %p62 = por %p60, %p61
      %p63 = scmp.ne.s32.totalorder %s51, %s52
      %p64 = scmp.eq.s32.totalorder %s21, 1
      %p65 = por %p63, %p64
      %p67 = scmp.ne.s32.totalorder %s52, %s66
      %p68 = scmp.eq.s32.totalorder %s21, 0
      %p69 = por %p67, %p68
      %s71 = sadd.s32 %s70, 1
      %p74 = scmp.eq.s32.totalorder %s15, 1
      %p75 = scmp.ne.s32.totalorder %s70, %s72
      %p76 = scmp.eq.s32.totalorder %s15, 0
      %p77 = por %p75, %p76
      %p78 = scmp.ne.s32.totalorder %s70, %s72
      %p79 = scmp.eq.s32.totalorder %s20, 1
      %p80 = por %p78, %p79
      %p81 = scmp.ne.s32.totalorder %s72, %s73
      %p82 = scmp.eq.s32.totalorder %s20, 0
      %p83 = por %p81, %p82
      %p84 = scmp.ne.s32.totalorder %s72, %s73
      %p85 = scmp.eq.s32.totalorder %s21, 1
      %p86 = por %p84, %p85
      %p88 = scmp.ne.s32.totalorder %s73, %s87
      %p89 = scmp.eq.s32.totalorder %s21, 0
      %p90 = por %p88, %p89
      %s92 = sadd.s32 %s91, 1
      %p95 = scmp.eq.s32.totalorder %s15, 1
      %p96 = scmp.ne.s32.totalorder %s91, %s93
      %p97 = scmp.eq.s32.totalorder %s15, 0
      %p98 = por %p96, %p97
      %p99 = scmp.ne.s32.totalorder %s91, %s93
      %p100 = scmp.eq.s32.totalorder %s20, 1
      %p101 = por %p99, %p100
      %p102 = scmp.ne.s32.totalorder %s93, %s94
      %p103 = scmp.eq.s32.totalorder %s20, 0
      %p104 = por %p102, %p103
      %p105 = scmp.ne.s32.totalorder %s93, %s94
      %p106 = scmp.eq.s32.totalorder %s21, 1
      %p107 = por %p105, %p106
      %p109 = scmp.ne.s32.totalorder %s94, %s108
      %p110 = scmp.eq.s32.totalorder %s21, 0
      %p111 = por %p109, %p110
      %s113 = sadd.s32 %s112, 1
      %p116 = scmp.eq.s32.totalorder %s15, 1
      %p117 = scmp.ne.s32.totalorder %s112, %s114
      %p118 = scmp.eq.s32.totalorder %s15, 0
      %p119 = por %p117, %p118
      %p120 = scmp.ne.s32.totalorder %s112, %s114
      %p121 = scmp.eq.s32.totalorder %s20, 1
      %p122 = por %p120, %p121
      %p123 = scmp.ne.s32.totalorder %s114, %s115
      %p124 = scmp.eq.s32.totalorder %s20, 0
      %p125 = por %p123, %p124
      %p126 = scmp.ne.s32.totalorder %s114, %s115
      %p127 = scmp.eq.s32.totalorder %s21, 1
      %p128 = por %p126, %p127
      %p130 = scmp.ne.s32.totalorder %s115, %s129
      %p131 = scmp.eq.s32.totalorder %s21, 0
      %p132 = por %p130, %p131
      %s134 = sadd.s32 %s133, 1
      %p137 = scmp.eq.s32.totalorder %s15, 1
      %p138 = scmp.ne.s32.totalorder %s133, %s135
      %p139 = scmp.eq.s32.totalorder %s15, 0
      %p140 = por %p138, %p139
      %p141 = scmp.ne.s32.totalorder %s133, %s135
      %p142 = scmp.eq.s32.totalorder %s20, 1
      %p143 = por %p141, %p142
      %p144 = scmp.ne.s32.totalorder %s135, %s136
      %p145 = scmp.eq.s32.totalorder %s20, 0
      %p146 = por %p144, %p145
      %p147 = scmp.ne.s32.totalorder %s135, %s136
      %p148 = scmp.eq.s32.totalorder %s21, 1
      %p149 = por %p147, %p148
      %p151 = scmp.ne.s32.totalorder %s136, %s150
      %p152 = scmp.eq.s32.totalorder %s21, 0
      %p153 = por %p151, %p152
      %s155 = sadd.s32 %s154, 1
      %p158 = scmp.eq.s32.totalorder %s15, 1
      %p159 = scmp.ne.s32.totalorder %s154, %s156
      %p160 = scmp.eq.s32.totalorder %s15, 0
      %p161 = por %p159, %p160
      %p162 = scmp.ne.s32.totalorder %s154, %s156
      %p163 = scmp.eq.s32.totalorder %s20, 1
      %p164 = por %p162, %p163
      %p165 = scmp.ne.s32.totalorder %s156, %s157
      %p166 = scmp.eq.s32.totalorder %s20, 0
      %p167 = por %p165, %p166
      %p168 = scmp.ne.s32.totalorder %s156, %s157
      %p169 = scmp.eq.s32.totalorder %s21, 1
      %p170 = por %p168, %p169
      %p172 = scmp.ne.s32.totalorder %s157, %s171
      %p173 = scmp.eq.s32.totalorder %s21, 0
      %p174 = por %p172, %p173
      %s175 = ssub.s32 %s15, %s22
      %p176 = scmp.eq.s32.totalorder %s175, 0
      %s178 = sadd.s32 %s177, 1
      %s179 = scalar_select %p176, %s177, %s178
      %p182 = pneg %p176
      %p183 = scmp.eq.s32.totalorder %s15, 1
      %p184 = por %p182, %p183
      %p185 = scmp.ne.s32.totalorder %s177, %s180
      %p186 = scmp.eq.s32.totalorder %s15, 0
      %p187 = por %p185, %p186
      %p188 = scmp.ne.s32.totalorder %s177, %s180
      %p189 = scmp.eq.s32.totalorder %s20, 1
      %p190 = por %p188, %p189
      %p191 = scmp.ne.s32.totalorder %s180, %s181
      %p192 = scmp.eq.s32.totalorder %s20, 0
      %p193 = por %p191, %p192
      %p194 = scmp.ne.s32.totalorder %s180, %s181
      %p195 = scmp.eq.s32.totalorder %s21, 1
      %p196 = por %p194, %p195
      %p198 = scmp.ne.s32.totalorder %s181, %s197
      %p199 = scmp.eq.s32.totalorder %s21, 0
      %p200 = por %p198, %p199
      %p201 = scmp.le.s32.totalorder 1, %s15
      %p202 = scmp.lt.s32.totalorder %s15, 3
      %p203 = pnand %p201, %p202
      %p204 = pneg %p203
      // Predicated region
      $region9: #{actor_forward.1} parent=5 // pred_check
        _
      $region10: #{actor_forward.1} parent=5 // pred_check_branch
        %206 = sbr.rel (%p203) target = $region12
      $region11: #{actor_forward.1} parent=5 // pred_region
        %s207 = ssub.s32 %s15, 1
        // Predicated region
        $region13: #{actor_forward.1} parent=11 // pred_check
          %p208 = pneg %p62
        $region14: #{actor_forward.1} parent=11 // pred_check_branch
          %210 = sbr.rel (%p208) target = $region16
        $region15: #{actor_forward.1} parent=11 // pred_region
          _
        $region16: #{actor_forward.1} parent=11 // pred_fallthru
          _
        // Predicated region
        $region17: #{actor_forward.1} parent=11 // pred_check
          %p211 = pneg %p83
        $region18: #{actor_forward.1} parent=11 // pred_check_branch
          %213 = sbr.rel (%p211) target = $region20
        $region19: #{actor_forward.1} parent=11 // pred_region
          _
        $region20: #{actor_forward.1} parent=11 // pred_fallthru
          _
        // Predicated region
        $region21: #{actor_forward.1} parent=11 // pred_check
          %p214 = pneg %p104
        $region22: #{actor_forward.1} parent=11 // pred_check_branch
          %216 = sbr.rel (%p214) target = $region24
        $region23: #{actor_forward.1} parent=11 // pred_region
          %s218 = ssub.s32 24576, 24576
          %219 = vsyncadd [#allocation3], %s218
          %s220 = sshll.u32 [#allocation2], 4
          %s221 = int_to_ptr.vmem [resolvable:$true] %s220
          %226 = dma.hbm_to_vmem [thread:$0]  %s3, 24576, %s221, [#allocation3], 384, 384, 24
        $region24: #{actor_forward.1} parent=11 // pred_fallthru
          _
        // Predicated region
        $region25: #{actor_forward.1} parent=11 // pred_check
          %p227 = pneg %p125
        $region26: #{actor_forward.1} parent=11 // pred_check_branch
          %229 = sbr.rel (%p227) target = $region28
        $region27: #{actor_forward.1} parent=11 // pred_region
          _
        $region28: #{actor_forward.1} parent=11 // pred_fallthru
          _
        // Predicated region
        $region29: #{actor_forward.1} parent=11 // pred_check
          %p230 = pneg %p146
        $region30: #{actor_forward.1} parent=11 // pred_check_branch
          %232 = sbr.rel (%p230) target = $region32
        $region31: #{actor_forward.1} parent=11 // pred_region
          %s234 = ssub.s32 6144, 6144
          %235 = vsyncadd [#allocation5], %s234
          %s236 = sshll.u32 [#allocation4], 4
          %s237 = int_to_ptr.vmem [resolvable:$true] %s236
          %242 = dma.hbm_to_vmem [thread:$0]  %s5, 6144, %s237, [#allocation5], 128, 128, 8
        $region32: #{actor_forward.1} parent=11 // pred_fallthru
          _
        // Predicated region
        $region33: #{actor_forward.1} parent=11 // pred_check
          %p243 = pneg %p167
        $region34: #{actor_forward.1} parent=11 // pred_check_branch
          %245 = sbr.rel (%p243) target = $region36
        $region35: #{actor_forward.1} parent=11 // pred_region
          _
        $region36: #{actor_forward.1} parent=11 // pred_fallthru
          _
      $region12: #{actor_forward.1} parent=5 // pred_fallthru
        _
      %p246 = scmp.lt.s32.totalorder %s15, 2
      // Predicated region
      $region37: #{actor_forward.1} parent=5 // pred_check
        %p247 = pneg %p246
      $region38: #{actor_forward.1} parent=5 // pred_check_branch
        %249 = sbr.rel (%p247) target = $region40
      $region39: #{actor_forward.1} parent=5 // pred_region
        // Predicated region
        $region41: #{actor_forward.1} parent=39 // pred_check
          %p250 = pneg %p35
        $region42: #{actor_forward.1} parent=39 // pred_check_branch
          %252 = sbr.rel (%p250) target = $region44
        $region43: #{actor_forward.1} parent=39 // pred_region
          %s253 = smul.u32 4, %s15
          %p254 = scmp.lt.s32.totalorder %s253, 7
          %s255 = scalar_select %p254, %s253, 7
          %s256 = smul.addr %s255, 8
          %s257 = scalar_lea.vmem %s0, %s256
          %s258 = smul.u32 4, %s15
        $region44: #{actor_forward.1} parent=39 // pred_fallthru
          _
      $region40: #{actor_forward.1} parent=5 // pred_fallthru
        _
      %p259 = scmp.le.s32.totalorder 1, %s15
      %p260 = scmp.lt.s32.totalorder %s15, 3
      %p261 = pnand %p259, %p260
      %p262 = pneg %p261
      // Predicated region
      $region45: #{actor_forward.1} parent=5 // pred_check
        _
      $region46: #{actor_forward.1} parent=5 // pred_check_branch
        %264 = sbr.rel (%p261) target = $region48
      $region47: #{actor_forward.1} parent=5 // pred_region
        %s265 = ssub.s32 %s15, 1
        // Predicated region
        $region49: #{actor_forward.1} parent=47 // pred_check
          %p266 = pneg %p104
        $region50: #{actor_forward.1} parent=47 // pred_check_branch
          %268 = sbr.rel (%p266) target = $region52
        $region51: #{actor_forward.1} parent=47 // pred_region
          %269 = dma.done [#allocation3], 24576
        $region52: #{actor_forward.1} parent=47 // pred_fallthru
          _
        // Predicated region
        $region53: #{actor_forward.1} parent=47 // pred_check
          %p270 = pneg %p146
        $region54: #{actor_forward.1} parent=47 // pred_check_branch
          %272 = sbr.rel (%p270) target = $region56
        $region55: #{actor_forward.1} parent=47 // pred_region
          %273 = dma.done [#allocation5], 6144
        $region56: #{actor_forward.1} parent=47 // pred_fallthru
          _
        %s274 = smul.u32 4, %s20
        %p275 = scmp.lt.s32.totalorder %s274, 7
        %s276 = scalar_select %p275, %s274, 7
        %s277 = smul.addr %s276, 8
        %s278 = scalar_lea.vmem %s0, %s277
        %p279 = pneg %p41
        %p280 = pneg %p38
        %p281 = pneg %p62
        %p282 = pneg %p59
        %p283 = pneg %p83
        %p284 = pneg %p80
        %p285 = pneg %p104
        %p286 = pneg %p101
        %p287 = pneg %p125
        %p288 = pneg %p122
        %p289 = pneg %p146
        %p290 = pneg %p143
        %p291 = pneg %p167
        %p292 = pneg %p164
        %p293 = pneg %p193
        %p294 = pneg %p190
        %s295 = smul.u32 4, %s20
        %p296 = scmp.lt.s32.totalorder %s295, 7
        %s297 = scalar_select %p296, %s295, 7
        %s298 = smul.addr %s297, 8
        %s299 = scalar_lea.vmem %s7, %s298
        %s300 = smul.u32 4, %s20
        %p301 = scmp.lt.s32.totalorder %s300, 7
        %s302 = scalar_select %p301, %s300, 7
        %s303 = smul.addr %s302, 8
        %s304 = scalar_lea.vmem %s0, %s303
        %s305 = smul.u32 4, %s20
        %s306 = smul.u32 4, %s20
        %p307 = scmp.lt.s32.totalorder %s306, 7
        %s308 = scalar_select %p307, %s306, 7
        %s309 = smul.addr %s308, 8
        %s310 = scalar_lea.vmem %s7, %s309
        %s311 = smul.u32 4, %s20
        %v312 = vld [vmem:[%s304] sm:$0xff]
        %v313 = vld [vmem:[%s304 + $0x8] sm:$0xff]
        %v314 = vld [vmem:[%s304 + $0x10] sm:$0xff]
        %v315 = vld [vmem:[%s304 + $0x18] sm:$0xff]
        %v316 = vld [vmem:[%s1] sm:$0xff]
        %v317 = vld [vmem:[%s1 + $0x8] sm:$0xff]
        %v318 = vld [vmem:[%s1 + $0x10] sm:$0xff]
        %v319 = vld [vmem:[%s1 + $0x18] sm:$0xff]
        %v320 = vld [vmem:[%s1 + $0x20] sm:$0xff]
        %v321 = vld [vmem:[%s1 + $0x28] sm:$0xff]
        %v322 = vld [vmem:[%s1 + $0x30] sm:$0xff]
        %v323 = vld [vmem:[%s1 + $0x38] sm:$0xff]
        %v324 = vld [vmem:[%s2] ss:$4 sm:$0xf]
        %v326 = vlaneseq
        %v327 = vshrl.u32 %v326, 7
        %v328 = vsub.s32 0, %v327
        %v329 = vrot.slane %v324, %v328
        %v330 = vlaneseq
        %v331 = vshrl.u32 %v330, 7
        %v332 = vsub.s32 1, %v331
        %v333 = vrot.slane %v324, %v332
        %v334 = vlaneseq
        %v335 = vshrl.u32 %v334, 7
        %v336 = vsub.s32 2, %v335
        %v337 = vrot.slane %v324, %v336
        %v338 = vlaneseq
        %v339 = vshrl.u32 %v338, 7
        %v340 = vsub.s32 3, %v339
        %v341 = vrot.slane %v324, %v340
        %vm346 = vcmask 130048
        %v348 = vsel %vm346, %v312, 0
        %v351 = vsel %vm346, %v313, 0
        %v354 = vsel %vm346, %v314, 0
        %v357 = vsel %vm346, %v315, 0
        %359 = vmatprep.subr.mxu0 %v317
        %360 = vmatpush1.msra.mxu0 %v316
        %361 = vmatprep.subr.mxu0 %v321
        %362 = vmatpush1.msra.mxu0 %v320
        %363 = vmatprep.subr.mxu0 0.0
        %364 = vmatpush1.msra.mxu0 0.0
        %365 = vmatprep.subr.mxu0 0.0
        %366 = vmatpush1.msra.mxu0 0.0
        %367 = vmatprep.subr.mxu0 0.0
        %368 = vmatpush1.msra.mxu0 0.0
        %369 = vmatprep.subr.mxu0 0.0
        %370 = vmatpush1.msra.mxu0 0.0
        %371 = vmatprep.subr.mxu0 0.0
        %372 = vmatpush1.msra.mxu0 0.0
        %373 = vmatprep.subr.mxu0 0.0
        %374 = vmatpush1.msra.mxu0 0.0
        %375 = vmatprep.subr.mxu0 0.0
        %376 = vmatpush1.msra.mxu0 0.0
        %377 = vmatprep.subr.mxu0 0.0
        %378 = vmatpush1.msra.mxu0 0.0
        %379 = vmatprep.subr.mxu0 0.0
        %380 = vmatpush1.msra.mxu0 0.0
        %381 = vmatprep.subr.mxu0 0.0
        %382 = vmatpush1.msra.mxu0 0.0
        %383 = vmatprep.subr.mxu0 0.0
        %384 = vmatpush1.msra.mxu0 0.0
        %385 = vmatprep.subr.mxu0 0.0
        %386 = vmatpush1.msra.mxu0 0.0
        %387 = vmatprep.subr.mxu0 0.0
        %388 = vmatpush1.msra.mxu0 0.0
        %389 = vmatprep.subr.mxu0 0.0
        %390 = vmatpush1.msra.mxu0 0.0
        %391 = vmatprep.subr.mxu0 0.0
        %392 = vmatpush1.msra.mxu0 0.0
        %393 = vmatprep.subr.mxu0 0.0
        %394 = vmatpush1.msra.mxu0 0.0
        %395 = vmatprep.subr.mxu0 0.0
        %396 = vmatpush1.msra.mxu0 0.0
        %397 = vmatprep.subr.mxu0 0.0
        %398 = vmatpush1.msra.mxu0 0.0
        %399 = vmatprep.subr.mxu0 0.0
        %400 = vmatpush1.msra.mxu0 0.0
        %401 = vmatprep.subr.mxu0 0.0
        %402 = vmatpush1.msra.mxu0 0.0
        %403 = vmatprep.subr.mxu0 0.0
        %404 = vmatpush1.msra.mxu0 0.0
        %405 = vmatprep.subr.mxu0 0.0
        %406 = vmatpush1.msra.mxu0 0.0
        %407 = vmatprep.subr.mxu0 0.0
        %408 = vmatpush1.msra.mxu0 0.0
        %409 = vmatprep.subr.mxu0 0.0
        %410 = vmatpush1.msra.mxu0 0.0
        %411 = vmatprep.subr.mxu0 0.0
        %412 = vmatpush1.msra.mxu0 0.0
        %413 = vmatprep.subr.mxu0 0.0
        %414 = vmatpush1.msra.mxu0 0.0
        %415 = vmatprep.subr.mxu0 0.0
        %416 = vmatpush1.msra.mxu0 0.0
        %417 = vmatprep.subr.mxu0 0.0
        %418 = vmatpush1.msra.mxu0 0.0
        %419 = vmatprep.subr.mxu0 0.0
        %420 = vmatpush1.msra.mxu0 0.0
        %421 = vmatprep.subr.mxu0 0.0
        %422 = vmatpush1.msra.mxu0 0.0
        %423 = vmatprep.mubr.f32.mxu0 0.0
        %424 = vmatmul.mubr.f32.gmra.mrb[0].mxu0 %v348
        %v425 = vpop.f32.mrb[0].mxu0
        %v426 = vadd.f32 %v329, %v425
        %v427 = vpop.f32.mrb[0].mxu0
        %v428 = vadd.f32 %v333, %v427
        %429 = vmatprep.mubr.f32.mxu0 0.0
        %430 = vmatmul.mubr.f32.gmra.mrb[0].mxu0 %v351
        %v431 = vpop.f32.mrb[0].mxu0
        %v432 = vadd.f32 %v329, %v431
        %v433 = vpop.f32.mrb[0].mxu0
        %v434 = vadd.f32 %v333, %v433
        %435 = vmatprep.mubr.f32.mxu0 0.0
        %436 = vmatmul.mubr.f32.gmra.mrb[0].mxu0 %v354
        %v437 = vpop.f32.mrb[0].mxu0
        %v438 = vadd.f32 %v329, %v437
        %v439 = vpop.f32.mrb[0].mxu0
        %v440 = vadd.f32 %v333, %v439
        %441 = vmatprep.mubr.f32.mxu0 0.0
        %442 = vmatmul.mubr.f32.gmra.mrb[0].mxu0 %v357
        %v443 = vpop.f32.mrb[0].mxu0
        %v444 = vadd.f32 %v329, %v443
        %v445 = vpop.f32.mrb[0].mxu0
        %v446 = vadd.f32 %v333, %v445
        %447 = vdwg.mxu0
        %448 = vmatprep.subr.mxu0 %v319
        %449 = vmatpush1.msra.mxu0 %v318
        %450 = vmatprep.subr.mxu0 %v323
        %451 = vmatpush1.msra.mxu0 %v322
        %452 = vmatprep.subr.mxu0 0.0
        %453 = vmatpush1.msra.mxu0 0.0
        %454 = vmatprep.subr.mxu0 0.0
        %455 = vmatpush1.msra.mxu0 0.0
        %456 = vmatprep.subr.mxu0 0.0
        %457 = vmatpush1.msra.mxu0 0.0
        %458 = vmatprep.subr.mxu0 0.0
        %459 = vmatpush1.msra.mxu0 0.0
        %460 = vmatprep.subr.mxu0 0.0
        %461 = vmatpush1.msra.mxu0 0.0
        %462 = vmatprep.subr.mxu0 0.0
        %463 = vmatpush1.msra.mxu0 0.0
        %464 = vmatprep.subr.mxu0 0.0
        %465 = vmatpush1.msra.mxu0 0.0
        %466 = vmatprep.subr.mxu0 0.0
        %467 = vmatpush1.msra.mxu0 0.0
        %468 = vmatprep.subr.mxu0 0.0
        %469 = vmatpush1.msra.mxu0 0.0
        %470 = vmatprep.subr.mxu0 0.0
        %471 = vmatpush1.msra.mxu0 0.0
        %472 = vmatprep.subr.mxu0 0.0
        %473 = vmatpush1.msra.mxu0 0.0
        %474 = vmatprep.subr.mxu0 0.0
        %475 = vmatpush1.msra.mxu0 0.0
        %476 = vmatprep.subr.mxu0 0.0
        %477 = vmatpush1.msra.mxu0 0.0
        %478 = vmatprep.subr.mxu0 0.0
        %479 = vmatpush1.msra.mxu0 0.0
        %480 = vmatprep.subr.mxu0 0.0
        %481 = vmatpush1.msra.mxu0 0.0
        %482 = vmatprep.subr.mxu0 0.0
        %483 = vmatpush1.msra.mxu0 0.0
        %484 = vmatprep.subr.mxu0 0.0
        %485 = vmatpush1.msra.mxu0 0.0
        %486 = vmatprep.subr.mxu0 0.0
        %487 = vmatpush1.msra.mxu0 0.0
        %488 = vmatprep.subr.mxu0 0.0
        %489 = vmatpush1.msra.mxu0 0.0
        %490 = vmatprep.subr.mxu0 0.0
        %491 = vmatpush1.msra.mxu0 0.0
        %492 = vmatprep.subr.mxu0 0.0
        %493 = vmatpush1.msra.mxu0 0.0
        %494 = vmatprep.subr.mxu0 0.0
        %495 = vmatpush1.msra.mxu0 0.0
        %496 = vmatprep.subr.mxu0 0.0
        %497 = vmatpush1.msra.mxu0 0.0
        %498 = vmatprep.subr.mxu0 0.0
        %499 = vmatpush1.msra.mxu0 0.0
        %500 = vmatprep.subr.mxu0 0.0
        %501 = vmatpush1.msra.mxu0 0.0
        %502 = vmatprep.subr.mxu0 0.0
        %503 = vmatpush1.msra.mxu0 0.0
        %504 = vmatprep.subr.mxu0 0.0
        %505 = vmatpush1.msra.mxu0 0.0
        %506 = vmatprep.subr.mxu0 0.0
        %507 = vmatpush1.msra.mxu0 0.0
        %508 = vmatprep.subr.mxu0 0.0
        %509 = vmatpush1.msra.mxu0 0.0
        %510 = vmatprep.subr.mxu0 0.0
        %511 = vmatpush1.msra.mxu0 0.0
        %512 = vmatprep.mubr.f32.mxu0 0.0
        %513 = vmatmul.mubr.f32.gmra.mrb[0].mxu0 %v348
        %v514 = vpop.f32.mrb[0].mxu0
        %v515 = vadd.f32 %v337, %v514
        %v516 = vpop.f32.mrb[0].mxu0
        %v517 = vadd.f32 %v341, %v516
        %518 = vmatprep.mubr.f32.mxu0 0.0
        %519 = vmatmul.mubr.f32.gmra.mrb[0].mxu0 %v351
        %v520 = vpop.f32.mrb[0].mxu0
        %v521 = vadd.f32 %v337, %v520
        %v522 = vpop.f32.mrb[0].mxu0
        %v523 = vadd.f32 %v341, %v522
        %524 = vmatprep.mubr.f32.mxu0 0.0
        %525 = vmatmul.mubr.f32.gmra.mrb[0].mxu0 %v354
        %v526 = vpop.f32.mrb[0].mxu0
        %v527 = vadd.f32 %v337, %v526
        %v528 = vpop.f32.mrb[0].mxu0
        %v529 = vadd.f32 %v341, %v528
        %530 = vmatprep.mubr.f32.mxu0 0.0
        %531 = vmatmul.mubr.f32.gmra.mrb[0].mxu0 %v357
        %v532 = vpop.f32.mrb[0].mxu0
        %v533 = vadd.f32 %v337, %v532
        %v534 = vpop.f32.mrb[0].mxu0
        %v535 = vadd.f32 %v341, %v534
        %536 = vdwg.mxu0
        %s537 = scalar_lea.vmem %s2, 1
        %v538 = vld [vmem:[%s537] ss:$4 sm:$0xf]
        %s539 = scalar_lea.vmem %s2, 2
        %v540 = vld [vmem:[%s539] ss:$4 sm:$0xf]
        %v541 = vadd.f32 %v426, %v428
        %v542 = vadd.f32 %v541, %v515
        %v543 = vadd.f32 %v542, %v517
        %544 = vadd.xlane.f32.xlu0 %v543
        %v545 = vpop.xlane.xlu0 %544
        %v546 = vadd.f32 %v432, %v434
        %v547 = vadd.f32 %v546, %v521
        %v548 = vadd.f32 %v547, %v523
        %549 = vadd.xlane.f32.xlu0 %v548
        %v550 = vpop.xlane.xlu0 %549
        %v551 = vadd.f32 %v438, %v440
        %v552 = vadd.f32 %v551, %v527
        %v553 = vadd.f32 %v552, %v529
        %554 = vadd.xlane.f32.xlu0 %v553
        %v555 = vpop.xlane.xlu0 %554
        %v556 = vadd.f32 %v444, %v446
        %v557 = vadd.f32 %v556, %v533
        %v558 = vadd.f32 %v557, %v535
        %559 = vadd.xlane.f32.xlu0 %v558
        %v560 = vpop.xlane.xlu0 %559
        %v561 = vmul.f32 %v426, %v426
        %v562 = vmul.f32 %v428, %v428
        %v563 = vmul.f32 %v515, %v515
        %v564 = vmul.f32 %v517, %v517
        %v565 = vmul.f32 %v432, %v432
        %v566 = vmul.f32 %v434, %v434
        %v567 = vmul.f32 %v521, %v521
        %v568 = vmul.f32 %v523, %v523
        %v569 = vmul.f32 %v438, %v438
        %v570 = vmul.f32 %v440, %v440
        %v571 = vmul.f32 %v527, %v527
        %v572 = vmul.f32 %v529, %v529
        %v573 = vmul.f32 %v444, %v444
        %v574 = vmul.f32 %v446, %v446
        %v575 = vmul.f32 %v533, %v533
        %v576 = vmul.f32 %v535, %v535
        %v577 = vadd.f32 %v561, %v562
        %v578 = vadd.f32 %v577, %v563
        %v579 = vadd.f32 %v578, %v564
        %580 = vadd.xlane.f32.xlu0 %v579
        %v581 = vpop.xlane.xlu0 %580
        %v582 = vadd.f32 %v565, %v566
        %v583 = vadd.f32 %v582, %v567
        %v584 = vadd.f32 %v583, %v568
        %585 = vadd.xlane.f32.xlu0 %v584
        %v586 = vpop.xlane.xlu0 %585
        %v587 = vadd.f32 %v569, %v570
        %v588 = vadd.f32 %v587, %v571
        %v589 = vadd.f32 %v588, %v572
        %590 = vadd.xlane.f32.xlu0 %v589
        %v591 = vpop.xlane.xlu0 %590
        %v592 = vadd.f32 %v573, %v574
        %v593 = vadd.f32 %v592, %v575
        %v594 = vadd.f32 %v593, %v576
        %595 = vadd.xlane.f32.xlu0 %v594
        %v596 = vpop.xlane.xlu0 %595
        %v597 = vmul.f32 %v545, 0.0025
        %v598 = vmul.f32 %v550, 0.0025
        %v599 = vmul.f32 %v555, 0.0025
        %v600 = vmul.f32 %v560, 0.0025
        %v601 = vmul.f32 %v581, 0.0025
        %v602 = vmul.f32 %v586, 0.0025
        %v603 = vmul.f32 %v591, 0.0025
        %v604 = vmul.f32 %v596, 0.0025
        %v605 = vmul.f32 %v597, %v597
        %v606 = vmul.f32 %v598, %v598
        %v607 = vmul.f32 %v599, %v599
        %v608 = vmul.f32 %v600, %v600
        %v609 = vsub.f32 %v601, %v605
        %v610 = vsub.f32 %v602, %v606
        %v611 = vsub.f32 %v603, %v607
        %v612 = vsub.f32 %v604, %v608
        %v613 = vmax.f32 %v609, 0.0
        %v614 = vmax.f32 %v610, 0.0
        %v615 = vmax.f32 %v611, 0.0
        %v616 = vmax.f32 %v612, 0.0
        %v617 = vadd.f32 %v613, 1e-05
        %v618 = vadd.f32 %v614, 1e-05
        %v619 = vadd.f32 %v615, 1e-05
        %v620 = vadd.f32 %v616, 1e-05
        %v621 = vrsqrt.pop %v617
        %v622 = vrsqrt.pop %v618
        %v623 = vrsqrt.pop %v619
        %v624 = vrsqrt.pop %v620
        %v625 = vsub.f32 %v426, %v597
        %v626 = vsub.f32 %v428, %v597
        %v627 = vsub.f32 %v515, %v597
        %v628 = vsub.f32 %v517, %v597
        %v629 = vsub.f32 %v432, %v598
        %v630 = vsub.f32 %v434, %v598
        %v631 = vsub.f32 %v521, %v598
        %v632 = vsub.f32 %v523, %v598
        %v633 = vsub.f32 %v438, %v599
        %v634 = vsub.f32 %v440, %v599
        %v635 = vsub.f32 %v527, %v599
        %v636 = vsub.f32 %v529, %v599
        %v637 = vsub.f32 %v444, %v600
        %v638 = vsub.f32 %v446, %v600
        %v639 = vsub.f32 %v533, %v600
        %v640 = vsub.f32 %v535, %v600
        %v641 = vmul.f32 %v625, %v621
        %v642 = vmul.f32 %v626, %v621
        %v643 = vmul.f32 %v627, %v621
        %v644 = vmul.f32 %v628, %v621
        %v645 = vmul.f32 %v629, %v622
        %v646 = vmul.f32 %v630, %v622
        %v647 = vmul.f32 %v631, %v622
        %v648 = vmul.f32 %v632, %v622
        %v649 = vmul.f32 %v633, %v623
        %v650 = vmul.f32 %v634, %v623
        %v651 = vmul.f32 %v635, %v623
        %v652 = vmul.f32 %v636, %v623
        %v653 = vmul.f32 %v637, %v624
        %v654 = vmul.f32 %v638, %v624
        %v655 = vmul.f32 %v639, %v624
        %v656 = vmul.f32 %v640, %v624
        %v658 = vlaneseq
        %v659 = vshrl.u32 %v658, 7
        %v660 = vsub.s32 0, %v659
        %v661 = vrot.slane %v538, %v660
        %v662 = vlaneseq
        %v663 = vshrl.u32 %v662, 7
        %v664 = vsub.s32 1, %v663
        %v665 = vrot.slane %v538, %v664
        %v666 = vlaneseq
        %v667 = vshrl.u32 %v666, 7
        %v668 = vsub.s32 2, %v667
        %v669 = vrot.slane %v538, %v668
        %v670 = vlaneseq
        %v671 = vshrl.u32 %v670, 7
        %v672 = vsub.s32 3, %v671
        %v673 = vrot.slane %v538, %v672
        %v678 = vmul.f32 %v641, %v661
        %v679 = vmul.f32 %v642, %v665
        %v680 = vmul.f32 %v643, %v669
        %v681 = vmul.f32 %v644, %v673
        %v682 = vmul.f32 %v645, %v661
        %v683 = vmul.f32 %v646, %v665
        %v684 = vmul.f32 %v647, %v669
        %v685 = vmul.f32 %v648, %v673
        %v686 = vmul.f32 %v649, %v661
        %v687 = vmul.f32 %v650, %v665
        %v688 = vmul.f32 %v651, %v669
        %v689 = vmul.f32 %v652, %v673
        %v690 = vmul.f32 %v653, %v661
        %v691 = vmul.f32 %v654, %v665
        %v692 = vmul.f32 %v655, %v669
        %v693 = vmul.f32 %v656, %v673
        %v695 = vlaneseq
        %v696 = vshrl.u32 %v695, 7
        %v697 = vsub.s32 0, %v696
        %v698 = vrot.slane %v540, %v697
        %v699 = vlaneseq
        %v700 = vshrl.u32 %v699, 7
        %v701 = vsub.s32 1, %v700
        %v702 = vrot.slane %v540, %v701
        %v703 = vlaneseq
        %v704 = vshrl.u32 %v703, 7
        %v705 = vsub.s32 2, %v704
        %v706 = vrot.slane %v540, %v705
        %v707 = vlaneseq
        %v708 = vshrl.u32 %v707, 7
        %v709 = vsub.s32 3, %v708
        %v710 = vrot.slane %v540, %v709
        %v715 = vadd.f32 %v678, %v698
        %v716 = vadd.f32 %v679, %v702
        %v717 = vadd.f32 %v680, %v706
        %v718 = vadd.f32 %v681, %v710
        %v719 = vadd.f32 %v682, %v698
        %v720 = vadd.f32 %v683, %v702
        %v721 = vadd.f32 %v684, %v706
        %v722 = vadd.f32 %v685, %v710
        %v723 = vadd.f32 %v686, %v698
        %v724 = vadd.f32 %v687, %v702
        %v725 = vadd.f32 %v688, %v706
        %v726 = vadd.f32 %v689, %v710
        %v727 = vadd.f32 %v690, %v698
        %v728 = vadd.f32 %v691, %v702
        %v729 = vadd.f32 %v692, %v706
        %v730 = vadd.f32 %v693, %v710
        %v731 = vmax.f32 %v715, 0.0
        %v732 = vmax.f32 %v716, 0.0
        %v733 = vmax.f32 %v717, 0.0
        %v734 = vmax.f32 %v718, 0.0
        %v735 = vmax.f32 %v719, 0.0
        %v736 = vmax.f32 %v720, 0.0
        %v737 = vmax.f32 %v721, 0.0
        %v738 = vmax.f32 %v722, 0.0
        %v739 = vmax.f32 %v723, 0.0
        %v740 = vmax.f32 %v724, 0.0
        %v741 = vmax.f32 %v725, 0.0
        %v742 = vmax.f32 %v726, 0.0
        %v743 = vmax.f32 %v727, 0.0
        %v744 = vmax.f32 %v728, 0.0
        %v745 = vmax.f32 %v729, 0.0
        %v746 = vmax.f32 %v730, 0.0
        %v747 = vld [vmem:[#allocation2] sm:$0xff]
        %v748 = vld [vmem:[#allocation2 + $0x8] sm:$0xff]
        %v749 = vld [vmem:[#allocation2 + $0x10] sm:$0xff]
        %v750 = vld [vmem:[#allocation2 + $0x18] sm:$0xff]
        %v751 = vld [vmem:[#allocation2 + $0x20] sm:$0xff]
        %v752 = vld [vmem:[#allocation2 + $0x28] sm:$0xff]
        %v753 = vld [vmem:[#allocation2 + $0x30] sm:$0xff]
        %v754 = vld [vmem:[#allocation2 + $0x38] sm:$0xff]
        %v755 = vld [vmem:[#allocation2 + $0x40] sm:$0xff]
        %v756 = vld [vmem:[#allocation2 + $0x48] sm:$0xff]
        %v757 = vld [vmem:[#allocation2 + $0x50] sm:$0xff]
        %v758 = vld [vmem:[#allocation2 + $0x58] sm:$0xff]
        %v759 = vld [vmem:[#allocation2 + $0x60] sm:$0xff]
        %v760 = vld [vmem:[#allocation2 + $0x68] sm:$0xff]
        %v761 = vld [vmem:[#allocation2 + $0x70] sm:$0xff]
        %v762 = vld [vmem:[#allocation2 + $0x78] sm:$0xff]
        %v763 = vld [vmem:[#allocation2 + $0x80] sm:$0xff]
        %v764 = vld [vmem:[#allocation2 + $0x88] sm:$0xff]
        %v765 = vld [vmem:[#allocation2 + $0x90] sm:$0xff]
        %v766 = vld [vmem:[#allocation2 + $0x98] sm:$0xff]
        %v767 = vld [vmem:[#allocation2 + $0xa0] sm:$0xff]
        %v768 = vld [vmem:[#allocation2 + $0xa8] sm:$0xff]
        %v769 = vld [vmem:[#allocation2 + $0xb0] sm:$0xff]
        %v770 = vld [vmem:[#allocation2 + $0xb8] sm:$0xff]
        %v771 = vld [vmem:[#allocation2 + $0xc0] sm:$0xff]
        %v772 = vld [vmem:[#allocation2 + $0xc8] sm:$0xff]
        %v773 = vld [vmem:[#allocation2 + $0xd0] sm:$0xff]
        %v774 = vld [vmem:[#allocation2 + $0xd8] sm:$0xff]
        %v775 = vld [vmem:[#allocation2 + $0xe0] sm:$0xff]
        %v776 = vld [vmem:[#allocation2 + $0xe8] sm:$0xff]
        %v777 = vld [vmem:[#allocation2 + $0xf0] sm:$0xff]
        %v778 = vld [vmem:[#allocation2 + $0xf8] sm:$0xff]
        %v779 = vld [vmem:[#allocation2 + $0x100] sm:$0xff]
        %v780 = vld [vmem:[#allocation2 + $0x108] sm:$0xff]
        %v781 = vld [vmem:[#allocation2 + $0x110] sm:$0xff]
        %v782 = vld [vmem:[#allocation2 + $0x118] sm:$0xff]
        %v783 = vld [vmem:[#allocation2 + $0x120] sm:$0xff]
        %v784 = vld [vmem:[#allocation2 + $0x128] sm:$0xff]
        %v785 = vld [vmem:[#allocation2 + $0x130] sm:$0xff]
        %v786 = vld [vmem:[#allocation2 + $0x138] sm:$0xff]
        %v787 = vld [vmem:[#allocation2 + $0x140] sm:$0xff]
        %v788 = vld [vmem:[#allocation2 + $0x148] sm:$0xff]
        %v789 = vld [vmem:[#allocation2 + $0x150] sm:$0xff]
        %v790 = vld [vmem:[#allocation2 + $0x158] sm:$0xff]
        %v791 = vld [vmem:[#allocation2 + $0x160] sm:$0xff]
        %v792 = vld [vmem:[#allocation2 + $0x168] sm:$0xff]
        %v793 = vld [vmem:[#allocation2 + $0x170] sm:$0xff]
        %v794 = vld [vmem:[#allocation2 + $0x178] sm:$0xff]
        %v795 = vld [vmem:[#allocation2 + $0x180] sm:$0xff]
        %v796 = vld [vmem:[#allocation2 + $0x188] sm:$0xff]
        %v797 = vld [vmem:[#allocation2 + $0x190] sm:$0xff]
        %v798 = vld [vmem:[#allocation2 + $0x198] sm:$0xff]
        %v799 = vld [vmem:[#allocation2 + $0x1a0] sm:$0xff]
        %v800 = vld [vmem:[#allocation2 + $0x1a8] sm:$0xff]
        %v801 = vld [vmem:[#allocation2 + $0x1b0] sm:$0xff]
        %v802 = vld [vmem:[#allocation2 + $0x1b8] sm:$0xff]
        %v803 = vld [vmem:[#allocation2 + $0x1c0] sm:$0xff]
        %v804 = vld [vmem:[#allocation2 + $0x1c8] sm:$0xff]
        %v805 = vld [vmem:[#allocation2 + $0x1d0] sm:$0xff]
        %v806 = vld [vmem:[#allocation2 + $0x1d8] sm:$0xff]
        %v807 = vld [vmem:[#allocation2 + $0x1e0] sm:$0xff]
        %v808 = vld [vmem:[#allocation2 + $0x1e8] sm:$0xff]
        %v809 = vld [vmem:[#allocation2 + $0x1f0] sm:$0xff]
        %v810 = vld [vmem:[#allocation2 + $0x1f8] sm:$0xff]
        %v811 = vld [vmem:[#allocation2 + $0x200] sm:$0xff]
        %v812 = vld [vmem:[#allocation2 + $0x208] sm:$0xff]
        %v813 = vld [vmem:[#allocation2 + $0x210] sm:$0xff]
        %v814 = vld [vmem:[#allocation2 + $0x218] sm:$0xff]
        %v815 = vld [vmem:[#allocation2 + $0x220] sm:$0xff]
        %v816 = vld [vmem:[#allocation2 + $0x228] sm:$0xff]
        %v817 = vld [vmem:[#allocation2 + $0x230] sm:$0xff]
        %v818 = vld [vmem:[#allocation2 + $0x238] sm:$0xff]
        %v819 = vld [vmem:[#allocation2 + $0x240] sm:$0xff]
        %v820 = vld [vmem:[#allocation2 + $0x248] sm:$0xff]
        %v821 = vld [vmem:[#allocation2 + $0x250] sm:$0xff]
        %v822 = vld [vmem:[#allocation2 + $0x258] sm:$0xff]
        %v823 = vld [vmem:[#allocation2 + $0x260] sm:$0xff]
        %v824 = vld [vmem:[#allocation2 + $0x268] sm:$0xff]
        %v825 = vld [vmem:[#allocation2 + $0x270] sm:$0xff]
        %v826 = vld [vmem:[#allocation2 + $0x278] sm:$0xff]
        %v827 = vld [vmem:[#allocation2 + $0x280] sm:$0xff]
        %v828 = vld [vmem:[#allocation2 + $0x288] sm:$0xff]
        %v829 = vld [vmem:[#allocation2 + $0x290] sm:$0xff]
        %v830 = vld [vmem:[#allocation2 + $0x298] sm:$0xff]
        %v831 = vld [vmem:[#allocation2 + $0x2a0] sm:$0xff]
        %v832 = vld [vmem:[#allocation2 + $0x2a8] sm:$0xff]
        %v833 = vld [vmem:[#allocation2 + $0x2b0] sm:$0xff]
        %v834 = vld [vmem:[#allocation2 + $0x2b8] sm:$0xff]
        %v835 = vld [vmem:[#allocation2 + $0x2c0] sm:$0xff]
        %v836 = vld [vmem:[#allocation2 + $0x2c8] sm:$0xff]
        %v837 = vld [vmem:[#allocation2 + $0x2d0] sm:$0xff]
        %v838 = vld [vmem:[#allocation2 + $0x2d8] sm:$0xff]
        %v839 = vld [vmem:[#allocation2 + $0x2e0] sm:$0xff]
        %v840 = vld [vmem:[#allocation2 + $0x2e8] sm:$0xff]
        %v841 = vld [vmem:[#allocation2 + $0x2f0] sm:$0xff]
        %v842 = vld [vmem:[#allocation2 + $0x2f8] sm:$0xff]
        %v843 = vld [vmem:[#allocation2 + $0x300] sm:$0xff]
        %v844 = vld [vmem:[#allocation2 + $0x308] sm:$0xff]
        %v845 = vld [vmem:[#allocation2 + $0x310] sm:$0xff]
        %v846 = vld [vmem:[#allocation2 + $0x318] sm:$0xff]
        %v847 = vld [vmem:[#allocation2 + $0x320] sm:$0xff]
        %v848 = vld [vmem:[#allocation2 + $0x328] sm:$0xff]
        %v849 = vld [vmem:[#allocation2 + $0x330] sm:$0xff]
        %v850 = vld [vmem:[#allocation2 + $0x338] sm:$0xff]
        %v851 = vld [vmem:[#allocation2 + $0x340] sm:$0xff]
        %v852 = vld [vmem:[#allocation2 + $0x348] sm:$0xff]
        %v853 = vld [vmem:[#allocation2 + $0x350] sm:$0xff]
        %v854 = vld [vmem:[#allocation2 + $0x358] sm:$0xff]
        %v855 = vld [vmem:[#allocation2 + $0x360] sm:$0xff]
        %v856 = vld [vmem:[#allocation2 + $0x368] sm:$0xff]
        %v857 = vld [vmem:[#allocation2 + $0x370] sm:$0xff]
        %v858 = vld [vmem:[#allocation2 + $0x378] sm:$0xff]
        %v859 = vld [vmem:[#allocation2 + $0x380] sm:$0xff]
        %v860 = vld [vmem:[#allocation2 + $0x388] sm:$0xff]
        %v861 = vld [vmem:[#allocation2 + $0x390] sm:$0xff]
        %v862 = vld [vmem:[#allocation2 + $0x398] sm:$0xff]
        %v863 = vld [vmem:[#allocation2 + $0x3a0] sm:$0xff]
        %v864 = vld [vmem:[#allocation2 + $0x3a8] sm:$0xff]
        %v865 = vld [vmem:[#allocation2 + $0x3b0] sm:$0xff]
        %v866 = vld [vmem:[#allocation2 + $0x3b8] sm:$0xff]
        %v867 = vld [vmem:[#allocation2 + $0x3c0] sm:$0xff]
        %v868 = vld [vmem:[#allocation2 + $0x3c8] sm:$0xff]
        %v869 = vld [vmem:[#allocation2 + $0x3d0] sm:$0xff]
        %v870 = vld [vmem:[#allocation2 + $0x3d8] sm:$0xff]
        %v871 = vld [vmem:[#allocation2 + $0x3e0] sm:$0xff]
        %v872 = vld [vmem:[#allocation2 + $0x3e8] sm:$0xff]
        %v873 = vld [vmem:[#allocation2 + $0x3f0] sm:$0xff]
        %v874 = vld [vmem:[#allocation2 + $0x3f8] sm:$0xff]
        %v875 = vld [vmem:[#allocation2 + $0x400] sm:$0xff]
        %v876 = vld [vmem:[#allocation2 + $0x408] sm:$0xff]
        %v877 = vld [vmem:[#allocation2 + $0x410] sm:$0xff]
        %v878 = vld [vmem:[#allocation2 + $0x418] sm:$0xff]
        %v879 = vld [vmem:[#allocation2 + $0x420] sm:$0xff]
        %v880 = vld [vmem:[#allocation2 + $0x428] sm:$0xff]
        %v881 = vld [vmem:[#allocation2 + $0x430] sm:$0xff]
        %v882 = vld [vmem:[#allocation2 + $0x438] sm:$0xff]
        %v883 = vld [vmem:[#allocation2 + $0x440] sm:$0xff]
        %v884 = vld [vmem:[#allocation2 + $0x448] sm:$0xff]
        %v885 = vld [vmem:[#allocation2 + $0x450] sm:$0xff]
        %v886 = vld [vmem:[#allocation2 + $0x458] sm:$0xff]
        %v887 = vld [vmem:[#allocation2 + $0x460] sm:$0xff]
        %v888 = vld [vmem:[#allocation2 + $0x468] sm:$0xff]
        %v889 = vld [vmem:[#allocation2 + $0x470] sm:$0xff]
        %v890 = vld [vmem:[#allocation2 + $0x478] sm:$0xff]
        %v891 = vld [vmem:[#allocation2 + $0x480] sm:$0xff]
        %v892 = vld [vmem:[#allocation2 + $0x488] sm:$0xff]
        %v893 = vld [vmem:[#allocation2 + $0x490] sm:$0xff]
        %v894 = vld [vmem:[#allocation2 + $0x498] sm:$0xff]
        %v895 = vld [vmem:[#allocation2 + $0x4a0] sm:$0xff]
        %v896 = vld [vmem:[#allocation2 + $0x4a8] sm:$0xff]
        %v897 = vld [vmem:[#allocation2 + $0x4b0] sm:$0xff]
        %v898 = vld [vmem:[#allocation2 + $0x4b8] sm:$0xff]
        %v899 = vld [vmem:[#allocation2 + $0x4c0] sm:$0xff]
        %v900 = vld [vmem:[#allocation2 + $0x4c8] sm:$0xff]
        %v901 = vld [vmem:[#allocation2 + $0x4d0] sm:$0xff]
        %v902 = vld [vmem:[#allocation2 + $0x4d8] sm:$0xff]
        %v903 = vld [vmem:[#allocation2 + $0x4e0] sm:$0xff]
        %v904 = vld [vmem:[#allocation2 + $0x4e8] sm:$0xff]
        %v905 = vld [vmem:[#allocation2 + $0x4f0] sm:$0xff]
        %v906 = vld [vmem:[#allocation2 + $0x4f8] sm:$0xff]
        %v907 = vld [vmem:[#allocation2 + $0x500] sm:$0xff]
        %v908 = vld [vmem:[#allocation2 + $0x508] sm:$0xff]
        %v909 = vld [vmem:[#allocation2 + $0x510] sm:$0xff]
        %v910 = vld [vmem:[#allocation2 + $0x518] sm:$0xff]
        %v911 = vld [vmem:[#allocation2 + $0x520] sm:$0xff]
        %v912 = vld [vmem:[#allocation2 + $0x528] sm:$0xff]
        %v913 = vld [vmem:[#allocation2 + $0x530] sm:$0xff]
        %v914 = vld [vmem:[#allocation2 + $0x538] sm:$0xff]
        %v915 = vld [vmem:[#allocation2 + $0x540] sm:$0xff]
        %v916 = vld [vmem:[#allocation2 + $0x548] sm:$0xff]
        %v917 = vld [vmem:[#allocation2 + $0x550] sm:$0xff]
        %v918 = vld [vmem:[#allocation2 + $0x558] sm:$0xff]
        %v919 = vld [vmem:[#allocation2 + $0x560] sm:$0xff]
        %v920 = vld [vmem:[#allocation2 + $0x568] sm:$0xff]
        %v921 = vld [vmem:[#allocation2 + $0x570] sm:$0xff]
        %v922 = vld [vmem:[#allocation2 + $0x578] sm:$0xff]
        %v923 = vld [vmem:[#allocation2 + $0x580] sm:$0xff]
        %v924 = vld [vmem:[#allocation2 + $0x588] sm:$0xff]
        %v925 = vld [vmem:[#allocation2 + $0x590] sm:$0xff]
        %v926 = vld [vmem:[#allocation2 + $0x598] sm:$0xff]
        %v927 = vld [vmem:[#allocation2 + $0x5a0] sm:$0xff]
        %v928 = vld [vmem:[#allocation2 + $0x5a8] sm:$0xff]
        %v929 = vld [vmem:[#allocation2 + $0x5b0] sm:$0xff]
        %v930 = vld [vmem:[#allocation2 + $0x5b8] sm:$0xff]
        %v931 = vld [vmem:[#allocation2 + $0x5c0] sm:$0xff]
        %v932 = vld [vmem:[#allocation2 + $0x5c8] sm:$0xff]
        %v933 = vld [vmem:[#allocation2 + $0x5d0] sm:$0xff]
        %v934 = vld [vmem:[#allocation2 + $0x5d8] sm:$0xff]
        %v935 = vld [vmem:[#allocation2 + $0x5e0] sm:$0xff]
        %v936 = vld [vmem:[#allocation2 + $0x5e8] sm:$0xff]
        %v937 = vld [vmem:[#allocation2 + $0x5f0] sm:$0xff]
        %v938 = vld [vmem:[#allocation2 + $0x5f8] sm:$0xff]
        %v939 = vld [vmem:[%s4] ss:$4 sm:$0x7]
        %v941 = vlaneseq
        %v942 = vshrl.u32 %v941, 7
        %v943 = vsub.s32 0, %v942
        %v944 = vrot.slane %v939, %v943
        %v945 = vlaneseq
        %v946 = vshrl.u32 %v945, 7
        %v947 = vsub.s32 1, %v946
        %v948 = vrot.slane %v939, %v947
        %v949 = vlaneseq
        %v950 = vshrl.u32 %v949, 7
        %v951 = vsub.s32 2, %v950
        %v952 = vrot.slane %v939, %v951
        %956 = vmatprep.subr.mxu0 %v748
        %957 = vmatpush1.msra.mxu0 %v747
        %958 = vmatprep.subr.mxu0 %v751
        %959 = vmatpush1.msra.mxu0 %v750
        %960 = vmatprep.subr.mxu0 %v754
        %961 = vmatpush1.msra.mxu0 %v753
        %962 = vmatprep.subr.mxu0 %v757
        %963 = vmatpush1.msra.mxu0 %v756
        %964 = vmatprep.subr.mxu0 %v760
        %965 = vmatpush1.msra.mxu0 %v759
        %966 = vmatprep.subr.mxu0 %v763
        %967 = vmatpush1.msra.mxu0 %v762
        %968 = vmatprep.subr.mxu0 %v766
        %969 = vmatpush1.msra.mxu0 %v765
        %970 = vmatprep.subr.mxu0 %v769
        %971 = vmatpush1.msra.mxu0 %v768
        %972 = vmatprep.subr.mxu0 %v772
        %973 = vmatpush1.msra.mxu0 %v771
        %974 = vmatprep.subr.mxu0 %v775
        %975 = vmatpush1.msra.mxu0 %v774
        %976 = vmatprep.subr.mxu0 %v778
        %977 = vmatpush1.msra.mxu0 %v777
        %978 = vmatprep.subr.mxu0 %v781
        %979 = vmatpush1.msra.mxu0 %v780
        %980 = vmatprep.subr.mxu0 %v784
        %981 = vmatpush1.msra.mxu0 %v783
        %982 = vmatprep.subr.mxu0 %v787
        %983 = vmatpush1.msra.mxu0 %v786
        %984 = vmatprep.subr.mxu0 %v790
        %985 = vmatpush1.msra.mxu0 %v789
        %986 = vmatprep.subr.mxu0 %v793
        %987 = vmatpush1.msra.mxu0 %v792
        %988 = vmatprep.subr.mxu0 %v796
        %989 = vmatpush1.msra.mxu0 %v795
        %990 = vmatprep.subr.mxu0 %v799
        %991 = vmatpush1.msra.mxu0 %v798
        %992 = vmatprep.subr.mxu0 %v802
        %993 = vmatpush1.msra.mxu0 %v801
        %994 = vmatprep.subr.mxu0 %v805
        %995 = vmatpush1.msra.mxu0 %v804
        %996 = vmatprep.subr.mxu0 %v808
        %997 = vmatpush1.msra.mxu0 %v807
        %998 = vmatprep.subr.mxu0 %v811
        %999 = vmatpush1.msra.mxu0 %v810
        %1000 = vmatprep.subr.mxu0 %v814
        %1001 = vmatpush1.msra.mxu0 %v813
        %1002 = vmatprep.subr.mxu0 %v817
        %1003 = vmatpush1.msra.mxu0 %v816
        %1004 = vmatprep.subr.mxu0 %v820
        %1005 = vmatpush1.msra.mxu0 %v819
        %1006 = vmatprep.subr.mxu0 %v823
        %1007 = vmatpush1.msra.mxu0 %v822
        %1008 = vmatprep.subr.mxu0 %v826
        %1009 = vmatpush1.msra.mxu0 %v825
        %1010 = vmatprep.subr.mxu0 %v829
        %1011 = vmatpush1.msra.mxu0 %v828
        %1012 = vmatprep.subr.mxu0 %v832
        %1013 = vmatpush1.msra.mxu0 %v831
        %1014 = vmatprep.subr.mxu0 %v835
        %1015 = vmatpush1.msra.mxu0 %v834
        %1016 = vmatprep.subr.mxu0 %v838
        %1017 = vmatpush1.msra.mxu0 %v837
        %1018 = vmatprep.subr.mxu0 %v841
        %1019 = vmatpush1.msra.mxu0 %v840
        %1020 = vmatprep.mubr.f32.mxu0 %v732
        %1021 = vmatmul.mubr.f32.gmra.mrb[0].mxu0 %v731
        %v1022 = vpop.f32.mrb[0].mxu0
        %v1023 = vadd.f32 %v944, %v1022
        %v1024 = vpop.f32.mrb[0].mxu0
        %v1025 = vadd.f32 %v948, %v1024
        %1026 = vmatprep.mubr.f32.mxu0 %v736
        %1027 = vmatmul.mubr.f32.gmra.mrb[0].mxu0 %v735
        %v1028 = vpop.f32.mrb[0].mxu0
        %v1029 = vadd.f32 %v944, %v1028
        %v1030 = vpop.f32.mrb[0].mxu0
        %v1031 = vadd.f32 %v948, %v1030
        %1032 = vmatprep.mubr.f32.mxu0 %v740
        %1033 = vmatmul.mubr.f32.gmra.mrb[0].mxu0 %v739
        %v1034 = vpop.f32.mrb[0].mxu0
        %v1035 = vadd.f32 %v944, %v1034
        %v1036 = vpop.f32.mrb[0].mxu0
        %v1037 = vadd.f32 %v948, %v1036
        %1038 = vmatprep.mubr.f32.mxu0 %v744
        %1039 = vmatmul.mubr.f32.gmra.mrb[0].mxu0 %v743
        %v1040 = vpop.f32.mrb[0].mxu0
        %v1041 = vadd.f32 %v944, %v1040
        %v1042 = vpop.f32.mrb[0].mxu0
        %v1043 = vadd.f32 %v948, %v1042
        %1044 = vdwg.mxu0
        %1045 = vmatprep.subr.mxu0 %v844
        %1046 = vmatpush1.msra.mxu0 %v843
        %1047 = vmatprep.subr.mxu0 %v847
        %1048 = vmatpush1.msra.mxu0 %v846
        %1049 = vmatprep.subr.mxu0 %v850
        %1050 = vmatpush1.msra.mxu0 %v849
        %1051 = vmatprep.subr.mxu0 %v853
        %1052 = vmatpush1.msra.mxu0 %v852
        %1053 = vmatprep.subr.mxu0 %v856
        %1054 = vmatpush1.msra.mxu0 %v855
        %1055 = vmatprep.subr.mxu0 %v859
        %1056 = vmatpush1.msra.mxu0 %v858
        %1057 = vmatprep.subr.mxu0 %v862
        %1058 = vmatpush1.msra.mxu0 %v861
        %1059 = vmatprep.subr.mxu0 %v865
        %1060 = vmatpush1.msra.mxu0 %v864
        %1061 = vmatprep.subr.mxu0 %v868
        %1062 = vmatpush1.msra.mxu0 %v867
        %1063 = vmatprep.subr.mxu0 %v871
        %1064 = vmatpush1.msra.mxu0 %v870
        %1065 = vmatprep.subr.mxu0 %v874
        %1066 = vmatpush1.msra.mxu0 %v873
        %1067 = vmatprep.subr.mxu0 %v877
        %1068 = vmatpush1.msra.mxu0 %v876
        %1069 = vmatprep.subr.mxu0 %v880
        %1070 = vmatpush1.msra.mxu0 %v879
        %1071 = vmatprep.subr.mxu0 %v883
        %1072 = vmatpush1.msra.mxu0 %v882
        %1073 = vmatprep.subr.mxu0 %v886
        %1074 = vmatpush1.msra.mxu0 %v885
        %1075 = vmatprep.subr.mxu0 %v889
        %1076 = vmatpush1.msra.mxu0 %v888
        %1077 = vmatprep.subr.mxu0 %v892
        %1078 = vmatpush1.msra.mxu0 %v891
        %1079 = vmatprep.subr.mxu0 %v895
        %1080 = vmatpush1.msra.mxu0 %v894
        %1081 = vmatprep.subr.mxu0 %v898
        %1082 = vmatpush1.msra.mxu0 %v897
        %1083 = vmatprep.subr.mxu0 %v901
        %1084 = vmatpush1.msra.mxu0 %v900
        %1085 = vmatprep.subr.mxu0 %v904
        %1086 = vmatpush1.msra.mxu0 %v903
        %1087 = vmatprep.subr.mxu0 %v907
        %1088 = vmatpush1.msra.mxu0 %v906
        %1089 = vmatprep.subr.mxu0 %v910
        %1090 = vmatpush1.msra.mxu0 %v909
        %1091 = vmatprep.subr.mxu0 %v913
        %1092 = vmatpush1.msra.mxu0 %v912
        %1093 = vmatprep.subr.mxu0 %v916
        %1094 = vmatpush1.msra.mxu0 %v915
        %1095 = vmatprep.subr.mxu0 %v919
        %1096 = vmatpush1.msra.mxu0 %v918
        %1097 = vmatprep.subr.mxu0 %v922
        %1098 = vmatpush1.msra.mxu0 %v921
        %1099 = vmatprep.subr.mxu0 %v925
        %1100 = vmatpush1.msra.mxu0 %v924
        %1101 = vmatprep.subr.mxu0 %v928
        %1102 = vmatpush1.msra.mxu0 %v927
        %1103 = vmatprep.subr.mxu0 %v931
        %1104 = vmatpush1.msra.mxu0 %v930
        %1105 = vmatprep.subr.mxu0 %v934
        %1106 = vmatpush1.msra.mxu0 %v933
        %1107 = vmatprep.subr.mxu0 %v937
        %1108 = vmatpush1.msra.mxu0 %v936
        %1109 = vmatprep.mubr.f32.mxu0 %v734
        %1110 = vmatmul.mubr.f32.gmra.mrb[0].mxu0 %v733
        %v1111 = vpop.f32.mrb[0].mxu0
        %v1112 = vadd.f32 %v1023, %v1111
        %v1113 = vpop.f32.mrb[0].mxu0
        %v1114 = vadd.f32 %v1025, %v1113
        %1115 = vmatprep.mubr.f32.mxu0 %v738
        %1116 = vmatmul.mubr.f32.gmra.mrb[0].mxu0 %v737
        %v1117 = vpop.f32.mrb[0].mxu0
        %v1118 = vadd.f32 %v1029, %v1117
        %v1119 = vpop.f32.mrb[0].mxu0
        %v1120 = vadd.f32 %v1031, %v1119
        %1121 = vmatprep.mubr.f32.mxu0 %v742
        %1122 = vmatmul.mubr.f32.gmra.mrb[0].mxu0 %v741
        %v1123 = vpop.f32.mrb[0].mxu0
        %v1124 = vadd.f32 %v1035, %v1123
        %v1125 = vpop.f32.mrb[0].mxu0
        %v1126 = vadd.f32 %v1037, %v1125
        %1127 = vmatprep.mubr.f32.mxu0 %v746
        %1128 = vmatmul.mubr.f32.gmra.mrb[0].mxu0 %v745
        %v1129 = vpop.f32.mrb[0].mxu0
        %v1130 = vadd.f32 %v1041, %v1129
        %v1131 = vpop.f32.mrb[0].mxu0
        %v1132 = vadd.f32 %v1043, %v1131
        %1133 = vdwg.mxu0
        %1134 = vmatprep.subr.mxu0 0.0
        %1135 = vmatpush1.msra.mxu0 %v749
        %1136 = vmatprep.subr.mxu0 0.0
        %1137 = vmatpush1.msra.mxu0 %v752
        %1138 = vmatprep.subr.mxu0 0.0
        %1139 = vmatpush1.msra.mxu0 %v755
        %1140 = vmatprep.subr.mxu0 0.0
        %1141 = vmatpush1.msra.mxu0 %v758
        %1142 = vmatprep.subr.mxu0 0.0
        %1143 = vmatpush1.msra.mxu0 %v761
        %1144 = vmatprep.subr.mxu0 0.0
        %1145 = vmatpush1.msra.mxu0 %v764
        %1146 = vmatprep.subr.mxu0 0.0
        %1147 = vmatpush1.msra.mxu0 %v767
        %1148 = vmatprep.subr.mxu0 0.0
        %1149 = vmatpush1.msra.mxu0 %v770
        %1150 = vmatprep.subr.mxu0 0.0
        %1151 = vmatpush1.msra.mxu0 %v773
        %1152 = vmatprep.subr.mxu0 0.0
        %1153 = vmatpush1.msra.mxu0 %v776
        %1154 = vmatprep.subr.mxu0 0.0
        %1155 = vmatpush1.msra.mxu0 %v779
        %1156 = vmatprep.subr.mxu0 0.0
        %1157 = vmatpush1.msra.mxu0 %v782
        %1158 = vmatprep.subr.mxu0 0.0
        %1159 = vmatpush1.msra.mxu0 %v785
        %1160 = vmatprep.subr.mxu0 0.0
        %1161 = vmatpush1.msra.mxu0 %v788
        %1162 = vmatprep.subr.mxu0 0.0
        %1163 = vmatpush1.msra.mxu0 %v791
        %1164 = vmatprep.subr.mxu0 0.0
        %1165 = vmatpush1.msra.mxu0 %v794
        %1166 = vmatprep.subr.mxu0 0.0
        %1167 = vmatpush1.msra.mxu0 %v797
        %1168 = vmatprep.subr.mxu0 0.0
        %1169 = vmatpush1.msra.mxu0 %v800
        %1170 = vmatprep.subr.mxu0 0.0
        %1171 = vmatpush1.msra.mxu0 %v803
        %1172 = vmatprep.subr.mxu0 0.0
        %1173 = vmatpush1.msra.mxu0 %v806
        %1174 = vmatprep.subr.mxu0 0.0
        %1175 = vmatpush1.msra.mxu0 %v809
        %1176 = vmatprep.subr.mxu0 0.0
        %1177 = vmatpush1.msra.mxu0 %v812
        %1178 = vmatprep.subr.mxu0 0.0
        %1179 = vmatpush1.msra.mxu0 %v815
        %1180 = vmatprep.subr.mxu0 0.0
        %1181 = vmatpush1.msra.mxu0 %v818
        %1182 = vmatprep.subr.mxu0 0.0
        %1183 = vmatpush1.msra.mxu0 %v821
        %1184 = vmatprep.subr.mxu0 0.0
        %1185 = vmatpush1.msra.mxu0 %v824
        %1186 = vmatprep.subr.mxu0 0.0
        %1187 = vmatpush1.msra.mxu0 %v827
        %1188 = vmatprep.subr.mxu0 0.0
        %1189 = vmatpush1.msra.mxu0 %v830
        %1190 = vmatprep.subr.mxu0 0.0
        %1191 = vmatpush1.msra.mxu0 %v833
        %1192 = vmatprep.subr.mxu0 0.0
        %1193 = vmatpush1.msra.mxu0 %v836
        %1194 = vmatprep.subr.mxu0 0.0
        %1195 = vmatpush1.msra.mxu0 %v839
        %1196 = vmatprep.subr.mxu0 0.0
        %1197 = vmatpush1.msra.mxu0 %v842
        %1198 = vmatprep.mubr.f32.mxu0 %v732
        %1199 = vmatmul.mubr.f32.gmra.mrb[0].mxu0 %v731
        %v1200 = vpop.f32.mrb[0].mxu0
        %v1201 = vadd.f32 %v952, %v1200
        %v1202 = vpop.f32.mrb[0].mxu0
        %1203 = vmatprep.mubr.f32.mxu0 %v736
        %1204 = vmatmul.mubr.f32.gmra.mrb[0].mxu0 %v735
        %v1205 = vpop.f32.mrb[0].mxu0
        %v1206 = vadd.f32 %v952, %v1205
        %v1207 = vpop.f32.mrb[0].mxu0
        %1208 = vmatprep.mubr.f32.mxu0 %v740
        %1209 = vmatmul.mubr.f32.gmra.mrb[0].mxu0 %v739
        %v1210 = vpop.f32.mrb[0].mxu0
        %v1211 = vadd.f32 %v952, %v1210
        %v1212 = vpop.f32.mrb[0].mxu0
        %1213 = vmatprep.mubr.f32.mxu0 %v744
        %1214 = vmatmul.mubr.f32.gmra.mrb[0].mxu0 %v743
        %v1215 = vpop.f32.mrb[0].mxu0
        %v1216 = vadd.f32 %v952, %v1215
        %v1217 = vpop.f32.mrb[0].mxu0
        %1218 = vdwg.mxu0
        %1219 = vmatprep.subr.mxu0 0.0
        %1220 = vmatpush1.msra.mxu0 %v845
        %1221 = vmatprep.subr.mxu0 0.0
        %1222 = vmatpush1.msra.mxu0 %v848
        %1223 = vmatprep.subr.mxu0 0.0
        %1224 = vmatpush1.msra.mxu0 %v851
        %1225 = vmatprep.subr.mxu0 0.0
        %1226 = vmatpush1.msra.mxu0 %v854
        %1227 = vmatprep.subr.mxu0 0.0
        %1228 = vmatpush1.msra.mxu0 %v857
        %1229 = vmatprep.subr.mxu0 0.0
        %1230 = vmatpush1.msra.mxu0 %v860
        %1231 = vmatprep.subr.mxu0 0.0
        %1232 = vmatpush1.msra.mxu0 %v863
        %1233 = vmatprep.subr.mxu0 0.0
        %1234 = vmatpush1.msra.mxu0 %v866
        %1235 = vmatprep.subr.mxu0 0.0
        %1236 = vmatpush1.msra.mxu0 %v869
        %1237 = vmatprep.subr.mxu0 0.0
        %1238 = vmatpush1.msra.mxu0 %v872
        %1239 = vmatprep.subr.mxu0 0.0
        %1240 = vmatpush1.msra.mxu0 %v875
        %1241 = vmatprep.subr.mxu0 0.0
        %1242 = vmatpush1.msra.mxu0 %v878
        %1243 = vmatprep.subr.mxu0 0.0
        %1244 = vmatpush1.msra.mxu0 %v881
        %1245 = vmatprep.subr.mxu0 0.0
        %1246 = vmatpush1.msra.mxu0 %v884
        %1247 = vmatprep.subr.mxu0 0.0
        %1248 = vmatpush1.msra.mxu0 %v887
        %1249 = vmatprep.subr.mxu0 0.0
        %1250 = vmatpush1.msra.mxu0 %v890
        %1251 = vmatprep.subr.mxu0 0.0
        %1252 = vmatpush1.msra.mxu0 %v893
        %1253 = vmatprep.subr.mxu0 0.0
        %1254 = vmatpush1.msra.mxu0 %v896
        %1255 = vmatprep.subr.mxu0 0.0
        %1256 = vmatpush1.msra.mxu0 %v899
        %1257 = vmatprep.subr.mxu0 0.0
        %1258 = vmatpush1.msra.mxu0 %v902
        %1259 = vmatprep.subr.mxu0 0.0
        %1260 = vmatpush1.msra.mxu0 %v905
        %1261 = vmatprep.subr.mxu0 0.0
        %1262 = vmatpush1.msra.mxu0 %v908
        %1263 = vmatprep.subr.mxu0 0.0
        %1264 = vmatpush1.msra.mxu0 %v911
        %1265 = vmatprep.subr.mxu0 0.0
        %1266 = vmatpush1.msra.mxu0 %v914
        %1267 = vmatprep.subr.mxu0 0.0
        %1268 = vmatpush1.msra.mxu0 %v917
        %1269 = vmatprep.subr.mxu0 0.0
        %1270 = vmatpush1.msra.mxu0 %v920
        %1271 = vmatprep.subr.mxu0 0.0
        %1272 = vmatpush1.msra.mxu0 %v923
        %1273 = vmatprep.subr.mxu0 0.0
        %1274 = vmatpush1.msra.mxu0 %v926
        %1275 = vmatprep.subr.mxu0 0.0
        %1276 = vmatpush1.msra.mxu0 %v929
        %1277 = vmatprep.subr.mxu0 0.0
        %1278 = vmatpush1.msra.mxu0 %v932
        %1279 = vmatprep.subr.mxu0 0.0
        %1280 = vmatpush1.msra.mxu0 %v935
        %1281 = vmatprep.subr.mxu0 0.0
        %1282 = vmatpush1.msra.mxu0 %v938
        %1283 = vmatprep.mubr.f32.mxu0 %v734
        %1284 = vmatmul.mubr.f32.gmra.mrb[0].mxu0 %v733
        %v1285 = vpop.f32.mrb[0].mxu0
        %v1286 = vadd.f32 %v1201, %v1285
        %v1287 = vpop.f32.mrb[0].mxu0
        %1288 = vmatprep.mubr.f32.mxu0 %v738
        %1289 = vmatmul.mubr.f32.gmra.mrb[0].mxu0 %v737
        %v1290 = vpop.f32.mrb[0].mxu0
        %v1291 = vadd.f32 %v1206, %v1290
        %v1292 = vpop.f32.mrb[0].mxu0
        %1293 = vmatprep.mubr.f32.mxu0 %v742
        %1294 = vmatmul.mubr.f32.gmra.mrb[0].mxu0 %v741
        %v1295 = vpop.f32.mrb[0].mxu0
        %v1296 = vadd.f32 %v1211, %v1295
        %v1297 = vpop.f32.mrb[0].mxu0
        %1298 = vmatprep.mubr.f32.mxu0 %v746
        %1299 = vmatmul.mubr.f32.gmra.mrb[0].mxu0 %v745
        %v1300 = vpop.f32.mrb[0].mxu0
        %v1301 = vadd.f32 %v1216, %v1300
        %v1302 = vpop.f32.mrb[0].mxu0
        %1303 = vdwg.mxu0
        %s1304 = scalar_lea.vmem %s4, 1
        %v1305 = vld [vmem:[%s1304] ss:$4 sm:$0x7]
        %s1306 = scalar_lea.vmem %s4, 2
        %v1307 = vld [vmem:[%s1306] ss:$4 sm:$0x7]
        %v1308 = vadd.f32 %v1112, %v1114
        %v1309 = vadd.f32 %v1308, %v1286
        %1310 = vadd.xlane.f32.xlu0 %v1309
        %v1311 = vpop.xlane.xlu0 %1310
        %v1312 = vadd.f32 %v1118, %v1120
        %v1313 = vadd.f32 %v1312, %v1291
        %1314 = vadd.xlane.f32.xlu0 %v1313
        %v1315 = vpop.xlane.xlu0 %1314
        %v1316 = vadd.f32 %v1124, %v1126
        %v1317 = vadd.f32 %v1316, %v1296
        %1318 = vadd.xlane.f32.xlu0 %v1317
        %v1319 = vpop.xlane.xlu0 %1318
        %v1320 = vadd.f32 %v1130, %v1132
        %v1321 = vadd.f32 %v1320, %v1301
        %1322 = vadd.xlane.f32.xlu0 %v1321
        %v1323 = vpop.xlane.xlu0 %1322
        %v1324 = vmul.f32 %v1112, %v1112
        %v1325 = vmul.f32 %v1114, %v1114
        %v1326 = vmul.f32 %v1286, %v1286
        %v1327 = vmul.f32 %v1118, %v1118
        %v1328 = vmul.f32 %v1120, %v1120
        %v1329 = vmul.f32 %v1291, %v1291
        %v1330 = vmul.f32 %v1124, %v1124
        %v1331 = vmul.f32 %v1126, %v1126
        %v1332 = vmul.f32 %v1296, %v1296
        %v1333 = vmul.f32 %v1130, %v1130
        %v1334 = vmul.f32 %v1132, %v1132
        %v1335 = vmul.f32 %v1301, %v1301
        %v1336 = vadd.f32 %v1324, %v1325
        %v1337 = vadd.f32 %v1336, %v1326
        %1338 = vadd.xlane.f32.xlu0 %v1337
        %v1339 = vpop.xlane.xlu0 %1338
        %v1340 = vadd.f32 %v1327, %v1328
        %v1341 = vadd.f32 %v1340, %v1329
        %1342 = vadd.xlane.f32.xlu0 %v1341
        %v1343 = vpop.xlane.xlu0 %1342
        %v1344 = vadd.f32 %v1330, %v1331
        %v1345 = vadd.f32 %v1344, %v1332
        %1346 = vadd.xlane.f32.xlu0 %v1345
        %v1347 = vpop.xlane.xlu0 %1346
        %v1348 = vadd.f32 %v1333, %v1334
        %v1349 = vadd.f32 %v1348, %v1335
        %1350 = vadd.xlane.f32.xlu0 %v1349
        %v1351 = vpop.xlane.xlu0 %1350
        %v1352 = vmul.f32 %v1311, 0.0033333334
        %v1353 = vmul.f32 %v1315, 0.0033333334
        %v1354 = vmul.f32 %v1319, 0.0033333334
        %v1355 = vmul.f32 %v1323, 0.0033333334
        %v1356 = vmul.f32 %v1339, 0.0033333334
        %v1357 = vmul.f32 %v1343, 0.0033333334
        %v1358 = vmul.f32 %v1347, 0.0033333334
        %v1359 = vmul.f32 %v1351, 0.0033333334
        %v1360 = vmul.f32 %v1352, %v1352
        %v1361 = vmul.f32 %v1353, %v1353
        %v1362 = vmul.f32 %v1354, %v1354
        %v1363 = vmul.f32 %v1355, %v1355
        %v1364 = vsub.f32 %v1356, %v1360
        %v1365 = vsub.f32 %v1357, %v1361
        %v1366 = vsub.f32 %v1358, %v1362
        %v1367 = vsub.f32 %v1359, %v1363
        %v1368 = vmax.f32 %v1364, 0.0
        %v1369 = vmax.f32 %v1365, 0.0
        %v1370 = vmax.f32 %v1366, 0.0
        %v1371 = vmax.f32 %v1367, 0.0
        %v1372 = vadd.f32 %v1368, 1e-05
        %v1373 = vadd.f32 %v1369, 1e-05
        %v1374 = vadd.f32 %v1370, 1e-05
        %v1375 = vadd.f32 %v1371, 1e-05
        %v1376 = vrsqrt.pop %v1372
        %v1377 = vrsqrt.pop %v1373
        %v1378 = vrsqrt.pop %v1374
        %v1379 = vrsqrt.pop %v1375
        %v1380 = vsub.f32 %v1112, %v1352
        %v1381 = vsub.f32 %v1114, %v1352
        %v1382 = vsub.f32 %v1286, %v1352
        %v1383 = vsub.f32 %v1118, %v1353
        %v1384 = vsub.f32 %v1120, %v1353
        %v1385 = vsub.f32 %v1291, %v1353
        %v1386 = vsub.f32 %v1124, %v1354
        %v1387 = vsub.f32 %v1126, %v1354
        %v1388 = vsub.f32 %v1296, %v1354
        %v1389 = vsub.f32 %v1130, %v1355
        %v1390 = vsub.f32 %v1132, %v1355
        %v1391 = vsub.f32 %v1301, %v1355
        %v1392 = vmul.f32 %v1380, %v1376
        %v1393 = vmul.f32 %v1381, %v1376
        %v1394 = vmul.f32 %v1382, %v1376
        %v1395 = vmul.f32 %v1383, %v1377
        %v1396 = vmul.f32 %v1384, %v1377
        %v1397 = vmul.f32 %v1385, %v1377
        %v1398 = vmul.f32 %v1386, %v1378
        %v1399 = vmul.f32 %v1387, %v1378
        %v1400 = vmul.f32 %v1388, %v1378
        %v1401 = vmul.f32 %v1389, %v1379
        %v1402 = vmul.f32 %v1390, %v1379
        %v1403 = vmul.f32 %v1391, %v1379
        %v1405 = vlaneseq
        %v1406 = vshrl.u32 %v1405, 7
        %v1407 = vsub.s32 0, %v1406
        %v1408 = vrot.slane %v1305, %v1407
        %v1409 = vlaneseq
        %v1410 = vshrl.u32 %v1409, 7
        %v1411 = vsub.s32 1, %v1410
        %v1412 = vrot.slane %v1305, %v1411
        %v1413 = vlaneseq
        %v1414 = vshrl.u32 %v1413, 7
        %v1415 = vsub.s32 2, %v1414
        %v1416 = vrot.slane %v1305, %v1415
        %v1420 = vmul.f32 %v1392, %v1408
        %v1421 = vmul.f32 %v1393, %v1412
        %v1422 = vmul.f32 %v1394, %v1416
        %v1423 = vmul.f32 %v1395, %v1408
        %v1424 = vmul.f32 %v1396, %v1412
        %v1425 = vmul.f32 %v1397, %v1416
        %v1426 = vmul.f32 %v1398, %v1408
        %v1427 = vmul.f32 %v1399, %v1412
        %v1428 = vmul.f32 %v1400, %v1416
        %v1429 = vmul.f32 %v1401, %v1408
        %v1430 = vmul.f32 %v1402, %v1412
        %v1431 = vmul.f32 %v1403, %v1416
        %v1433 = vlaneseq
        %v1434 = vshrl.u32 %v1433, 7
        %v1435 = vsub.s32 0, %v1434
        %v1436 = vrot.slane %v1307, %v1435
        %v1437 = vlaneseq
        %v1438 = vshrl.u32 %v1437, 7
        %v1439 = vsub.s32 1, %v1438
        %v1440 = vrot.slane %v1307, %v1439
        %v1441 = vlaneseq
        %v1442 = vshrl.u32 %v1441, 7
        %v1443 = vsub.s32 2, %v1442
        %v1444 = vrot.slane %v1307, %v1443
        %v1448 = vadd.f32 %v1420, %v1436
        %v1449 = vadd.f32 %v1421, %v1440
        %v1450 = vadd.f32 %v1422, %v1444
        %v1451 = vadd.f32 %v1423, %v1436
        %v1452 = vadd.f32 %v1424, %v1440
        %v1453 = vadd.f32 %v1425, %v1444
        %v1454 = vadd.f32 %v1426, %v1436
        %v1455 = vadd.f32 %v1427, %v1440
        %v1456 = vadd.f32 %v1428, %v1444
        %v1457 = vadd.f32 %v1429, %v1436
        %v1458 = vadd.f32 %v1430, %v1440
        %v1459 = vadd.f32 %v1431, %v1444
        %v1460 = vmax.f32 %v1448, 0.0
        %v1461 = vmax.f32 %v1449, 0.0
        %v1462 = vmax.f32 %v1450, 0.0
        %v1463 = vmax.f32 %v1451, 0.0
        %v1464 = vmax.f32 %v1452, 0.0
        %v1465 = vmax.f32 %v1453, 0.0
        %v1466 = vmax.f32 %v1454, 0.0
        %v1467 = vmax.f32 %v1455, 0.0
        %v1468 = vmax.f32 %v1456, 0.0
        %v1469 = vmax.f32 %v1457, 0.0
        %v1470 = vmax.f32 %v1458, 0.0
        %v1471 = vmax.f32 %v1459, 0.0
        %v1472 = vld [vmem:[#allocation4] sm:$0xff]
        %v1473 = vld [vmem:[#allocation4 + $0x8] sm:$0xff]
        %v1474 = vld [vmem:[#allocation4 + $0x10] sm:$0xff]
        %v1475 = vld [vmem:[#allocation4 + $0x18] sm:$0xff]
        %v1476 = vld [vmem:[#allocation4 + $0x20] sm:$0xff]
        %v1477 = vld [vmem:[#allocation4 + $0x28] sm:$0xff]
        %v1478 = vld [vmem:[#allocation4 + $0x30] sm:$0xff]
        %v1479 = vld [vmem:[#allocation4 + $0x38] sm:$0xff]
        %v1480 = vld [vmem:[#allocation4 + $0x40] sm:$0xff]
        %v1481 = vld [vmem:[#allocation4 + $0x48] sm:$0xff]
        %v1482 = vld [vmem:[#allocation4 + $0x50] sm:$0xff]
        %v1483 = vld [vmem:[#allocation4 + $0x58] sm:$0xff]
        %v1484 = vld [vmem:[#allocation4 + $0x60] sm:$0xff]
        %v1485 = vld [vmem:[#allocation4 + $0x68] sm:$0xff]
        %v1486 = vld [vmem:[#allocation4 + $0x70] sm:$0xff]
        %v1487 = vld [vmem:[#allocation4 + $0x78] sm:$0xff]
        %v1488 = vld [vmem:[#allocation4 + $0x80] sm:$0xff]
        %v1489 = vld [vmem:[#allocation4 + $0x88] sm:$0xff]
        %v1490 = vld [vmem:[#allocation4 + $0x90] sm:$0xff]
        %v1491 = vld [vmem:[#allocation4 + $0x98] sm:$0xff]
        %v1492 = vld [vmem:[#allocation4 + $0xa0] sm:$0xff]
        %v1493 = vld [vmem:[#allocation4 + $0xa8] sm:$0xff]
        %v1494 = vld [vmem:[#allocation4 + $0xb0] sm:$0xff]
        %v1495 = vld [vmem:[#allocation4 + $0xb8] sm:$0xff]
        %v1496 = vld [vmem:[#allocation4 + $0xc0] sm:$0xff]
        %v1497 = vld [vmem:[#allocation4 + $0xc8] sm:$0xff]
        %v1498 = vld [vmem:[#allocation4 + $0xd0] sm:$0xff]
        %v1499 = vld [vmem:[#allocation4 + $0xd8] sm:$0xff]
        %v1500 = vld [vmem:[#allocation4 + $0xe0] sm:$0xff]
        %v1501 = vld [vmem:[#allocation4 + $0xe8] sm:$0xff]
        %v1502 = vld [vmem:[#allocation4 + $0xf0] sm:$0xff]
        %v1503 = vld [vmem:[#allocation4 + $0xf8] sm:$0xff]
        %v1504 = vld [vmem:[#allocation4 + $0x100] sm:$0xff]
        %v1505 = vld [vmem:[#allocation4 + $0x108] sm:$0xff]
        %v1506 = vld [vmem:[#allocation4 + $0x110] sm:$0xff]
        %v1507 = vld [vmem:[#allocation4 + $0x118] sm:$0xff]
        %v1508 = vld [vmem:[#allocation4 + $0x120] sm:$0xff]
        %v1509 = vld [vmem:[#allocation4 + $0x128] sm:$0xff]
        %v1510 = vld [vmem:[#allocation4 + $0x130] sm:$0xff]
        %v1511 = vld [vmem:[#allocation4 + $0x138] sm:$0xff]
        %v1512 = vld [vmem:[#allocation4 + $0x140] sm:$0xff]
        %v1513 = vld [vmem:[#allocation4 + $0x148] sm:$0xff]
        %v1514 = vld [vmem:[#allocation4 + $0x150] sm:$0xff]
        %v1515 = vld [vmem:[#allocation4 + $0x158] sm:$0xff]
        %v1516 = vld [vmem:[#allocation4 + $0x160] sm:$0xff]
        %v1517 = vld [vmem:[#allocation4 + $0x168] sm:$0xff]
        %v1518 = vld [vmem:[#allocation4 + $0x170] sm:$0xff]
        %v1519 = vld [vmem:[#allocation4 + $0x178] sm:$0xff]
        %v1520 = vld [vmem:[%s6] sm:$0x1]
        %v1522 = vlaneseq
        %v1523 = vshrl.u32 %v1522, 7
        %v1524 = vsub.s32 0, %v1523
        %v1525 = vrot.slane %v1520, %v1524
        %1527 = vmatprep.subr.mxu0 0.0
        %1528 = vmatpush1.msra.mxu0 %v1472
        %1529 = vmatprep.subr.mxu0 0.0
        %1530 = vmatpush1.msra.mxu0 %v1473
        %1531 = vmatprep.subr.mxu0 0.0
        %1532 = vmatpush1.msra.mxu0 %v1474
        %1533 = vmatprep.subr.mxu0 0.0
        %1534 = vmatpush1.msra.mxu0 %v1475
        %1535 = vmatprep.subr.mxu0 0.0
        %1536 = vmatpush1.msra.mxu0 %v1476
        %1537 = vmatprep.subr.mxu0 0.0
        %1538 = vmatpush1.msra.mxu0 %v1477
        %1539 = vmatprep.subr.mxu0 0.0
        %1540 = vmatpush1.msra.mxu0 %v1478
        %1541 = vmatprep.subr.mxu0 0.0
        %1542 = vmatpush1.msra.mxu0 %v1479
        %1543 = vmatprep.subr.mxu0 0.0
        %1544 = vmatpush1.msra.mxu0 %v1480
        %1545 = vmatprep.subr.mxu0 0.0
        %1546 = vmatpush1.msra.mxu0 %v1481
        %1547 = vmatprep.subr.mxu0 0.0
        %1548 = vmatpush1.msra.mxu0 %v1482
        %1549 = vmatprep.subr.mxu0 0.0
        %1550 = vmatpush1.msra.mxu0 %v1483
        %1551 = vmatprep.subr.mxu0 0.0
        %1552 = vmatpush1.msra.mxu0 %v1484
        %1553 = vmatprep.subr.mxu0 0.0
        %1554 = vmatpush1.msra.mxu0 %v1485
        %1555 = vmatprep.subr.mxu0 0.0
        %1556 = vmatpush1.msra.mxu0 %v1486
        %1557 = vmatprep.subr.mxu0 0.0
        %1558 = vmatpush1.msra.mxu0 %v1487
        %1559 = vmatprep.subr.mxu0 0.0
        %1560 = vmatpush1.msra.mxu0 %v1488
        %1561 = vmatprep.subr.mxu0 0.0
        %1562 = vmatpush1.msra.mxu0 %v1489
        %1563 = vmatprep.subr.mxu0 0.0
        %1564 = vmatpush1.msra.mxu0 %v1490
        %1565 = vmatprep.subr.mxu0 0.0
        %1566 = vmatpush1.msra.mxu0 %v1491
        %1567 = vmatprep.subr.mxu0 0.0
        %1568 = vmatpush1.msra.mxu0 %v1492
        %1569 = vmatprep.subr.mxu0 0.0
        %1570 = vmatpush1.msra.mxu0 %v1493
        %1571 = vmatprep.subr.mxu0 0.0
        %1572 = vmatpush1.msra.mxu0 %v1494
        %1573 = vmatprep.subr.mxu0 0.0
        %1574 = vmatpush1.msra.mxu0 %v1495
        %1575 = vmatprep.subr.mxu0 0.0
        %1576 = vmatpush1.msra.mxu0 %v1496
        %1577 = vmatprep.subr.mxu0 0.0
        %1578 = vmatpush1.msra.mxu0 %v1497
        %1579 = vmatprep.subr.mxu0 0.0
        %1580 = vmatpush1.msra.mxu0 %v1498
        %1581 = vmatprep.subr.mxu0 0.0
        %1582 = vmatpush1.msra.mxu0 %v1499
        %1583 = vmatprep.subr.mxu0 0.0
        %1584 = vmatpush1.msra.mxu0 %v1500
        %1585 = vmatprep.subr.mxu0 0.0
        %1586 = vmatpush1.msra.mxu0 %v1501
        %1587 = vmatprep.subr.mxu0 0.0
        %1588 = vmatpush1.msra.mxu0 %v1502
        %1589 = vmatprep.subr.mxu0 0.0
        %1590 = vmatpush1.msra.mxu0 %v1503
        %1591 = vmatprep.mubr.f32.mxu0 %v1461
        %1592 = vmatmul.mubr.f32.gmra.mrb[0].mxu0 %v1460
        %v1593 = vpop.f32.mrb[0].mxu0
        %v1594 = vadd.f32 %v1525, %v1593
        %v1595 = vpop.f32.mrb[0].mxu0
        %1596 = vmatprep.mubr.f32.mxu0 %v1464
        %1597 = vmatmul.mubr.f32.gmra.mrb[0].mxu0 %v1463
        %v1598 = vpop.f32.mrb[0].mxu0
        %v1599 = vadd.f32 %v1525, %v1598
        %v1600 = vpop.f32.mrb[0].mxu0
        %1601 = vmatprep.mubr.f32.mxu0 %v1467
        %1602 = vmatmul.mubr.f32.gmra.mrb[0].mxu0 %v1466
        %v1603 = vpop.f32.mrb[0].mxu0
        %v1604 = vadd.f32 %v1525, %v1603
        %v1605 = vpop.f32.mrb[0].mxu0
        %1606 = vmatprep.mubr.f32.mxu0 %v1470
        %1607 = vmatmul.mubr.f32.gmra.mrb[0].mxu0 %v1469
        %v1608 = vpop.f32.mrb[0].mxu0
        %v1609 = vadd.f32 %v1525, %v1608
        %v1610 = vpop.f32.mrb[0].mxu0
        %1611 = vdwg.mxu0
        %1612 = vmatprep.subr.mxu0 0.0
        %1613 = vmatpush1.msra.mxu0 %v1504
        %1614 = vmatprep.subr.mxu0 0.0
        %1615 = vmatpush1.msra.mxu0 %v1505
        %1616 = vmatprep.subr.mxu0 0.0
        %1617 = vmatpush1.msra.mxu0 %v1506
        %1618 = vmatprep.subr.mxu0 0.0
        %1619 = vmatpush1.msra.mxu0 %v1507
        %1620 = vmatprep.subr.mxu0 0.0
        %1621 = vmatpush1.msra.mxu0 %v1508
        %1622 = vmatprep.subr.mxu0 0.0
        %1623 = vmatpush1.msra.mxu0 %v1509
        %1624 = vmatprep.subr.mxu0 0.0
        %1625 = vmatpush1.msra.mxu0 %v1510
        %1626 = vmatprep.subr.mxu0 0.0
        %1627 = vmatpush1.msra.mxu0 %v1511
        %1628 = vmatprep.subr.mxu0 0.0
        %1629 = vmatpush1.msra.mxu0 %v1512
        %1630 = vmatprep.subr.mxu0 0.0
        %1631 = vmatpush1.msra.mxu0 %v1513
        %1632 = vmatprep.subr.mxu0 0.0
        %1633 = vmatpush1.msra.mxu0 %v1514
        %1634 = vmatprep.subr.mxu0 0.0
        %1635 = vmatpush1.msra.mxu0 %v1515
        %1636 = vmatprep.subr.mxu0 0.0
        %1637 = vmatpush1.msra.mxu0 %v1516
        %1638 = vmatprep.subr.mxu0 0.0
        %1639 = vmatpush1.msra.mxu0 %v1517
        %1640 = vmatprep.subr.mxu0 0.0
        %1641 = vmatpush1.msra.mxu0 %v1518
        %1642 = vmatprep.subr.mxu0 0.0
        %1643 = vmatpush1.msra.mxu0 %v1519
        %1644 = vmatprep.subr.mxu0 0.0
        %1645 = vmatpush1.msra.mxu0 0.0
        %1646 = vmatprep.subr.mxu0 0.0
        %1647 = vmatpush1.msra.mxu0 0.0
        %1648 = vmatprep.subr.mxu0 0.0
        %1649 = vmatpush1.msra.mxu0 0.0
        %1650 = vmatprep.subr.mxu0 0.0
        %1651 = vmatpush1.msra.mxu0 0.0
        %1652 = vmatprep.subr.mxu0 0.0
        %1653 = vmatpush1.msra.mxu0 0.0
        %1654 = vmatprep.subr.mxu0 0.0
        %1655 = vmatpush1.msra.mxu0 0.0
        %1656 = vmatprep.subr.mxu0 0.0
        %1657 = vmatpush1.msra.mxu0 0.0
        %1658 = vmatprep.subr.mxu0 0.0
        %1659 = vmatpush1.msra.mxu0 0.0
        %1660 = vmatprep.subr.mxu0 0.0
        %1661 = vmatpush1.msra.mxu0 0.0
        %1662 = vmatprep.subr.mxu0 0.0
        %1663 = vmatpush1.msra.mxu0 0.0
        %1664 = vmatprep.subr.mxu0 0.0
        %1665 = vmatpush1.msra.mxu0 0.0
        %1666 = vmatprep.subr.mxu0 0.0
        %1667 = vmatpush1.msra.mxu0 0.0
        %1668 = vmatprep.subr.mxu0 0.0
        %1669 = vmatpush1.msra.mxu0 0.0
        %1670 = vmatprep.subr.mxu0 0.0
        %1671 = vmatpush1.msra.mxu0 0.0
        %1672 = vmatprep.subr.mxu0 0.0
        %1673 = vmatpush1.msra.mxu0 0.0
        %1674 = vmatprep.subr.mxu0 0.0
        %1675 = vmatpush1.msra.mxu0 0.0
        %1676 = vmatprep.mubr.f32.mxu0 0.0
        %1677 = vmatmul.mubr.f32.gmra.mrb[0].mxu0 %v1462
        %v1678 = vpop.f32.mrb[0].mxu0
        %v1679 = vadd.f32 %v1594, %v1678
        %v1680 = vpop.f32.mrb[0].mxu0
        %1681 = vmatprep.mubr.f32.mxu0 0.0
        %1682 = vmatmul.mubr.f32.gmra.mrb[0].mxu0 %v1465
        %v1683 = vpop.f32.mrb[0].mxu0
        %v1684 = vadd.f32 %v1599, %v1683
        %v1685 = vpop.f32.mrb[0].mxu0
        %1686 = vmatprep.mubr.f32.mxu0 0.0
        %1687 = vmatmul.mubr.f32.gmra.mrb[0].mxu0 %v1468
        %v1688 = vpop.f32.mrb[0].mxu0
        %v1689 = vadd.f32 %v1604, %v1688
        %v1690 = vpop.f32.mrb[0].mxu0
        %1691 = vmatprep.mubr.f32.mxu0 0.0
        %1692 = vmatmul.mubr.f32.gmra.mrb[0].mxu0 %v1471
        %v1693 = vpop.f32.mrb[0].mxu0
        %v1694 = vadd.f32 %v1609, %v1693
        %v1695 = vpop.f32.mrb[0].mxu0
        %1696 = vdwg.mxu0
        %v1697 = vtanh.pop %v1679
        %v1698 = vtanh.pop %v1684
        %v1699 = vtanh.pop %v1689
        %v1700 = vtanh.pop %v1694
        %1701 = vst [vmem:[%s310] sm:$0xff] %v1697
        %1702 = vst [vmem:[%s310 + $0x8] sm:$0xff] %v1698
        %1703 = vst [vmem:[%s310 + $0x10] sm:$0xff] %v1699
        %1704 = vst [vmem:[%s310 + $0x18] sm:$0xff] %v1700
        %s1705 = smul.u32 4, %s20
        %p1706 = scmp.lt.s32.totalorder %s1705, 7
        %s1707 = scalar_select %p1706, %s1705, 7
        %s1708 = smul.addr %s1707, 8
        %s1709 = scalar_lea.vmem %s7, %s1708
        // Predicated region
        $region57: #{actor_forward.1} parent=47 // pred_check
          %p1710 = pneg %p190
        $region58: #{actor_forward.1} parent=47 // pred_check_branch
          %1712 = sbr.rel (%p1710) target = $region60
        $region59: #{actor_forward.1} parent=47 // pred_region
          %s1713 = smul.u32 4, %s20
        $region60: #{actor_forward.1} parent=47 // pred_fallthru
          _
      $region48: #{actor_forward.1} parent=5 // pred_fallthru
        _
      %p1714 = scmp.le.s32.totalorder 2, %s15
      // Predicated region
      $region61: #{actor_forward.1} parent=5 // pred_check
        %p1715 = pneg %p1714
      $region62: #{actor_forward.1} parent=5 // pred_check_branch
        %1717 = sbr.rel (%p1715) target = $region64
      $region63: #{actor_forward.1} parent=5 // pred_region
        %s1718 = ssub.s32 %s15, 2
        // Predicated region
        $region65: #{actor_forward.1} parent=63 // pred_check
          %p1719 = pneg %p196
        $region66: #{actor_forward.1} parent=63 // pred_check_branch
          %1721 = sbr.rel (%p1719) target = $region68
        $region67: #{actor_forward.1} parent=63 // pred_region
          %s1722 = smul.u32 4, %s21
          %p1723 = scmp.lt.s32.totalorder %s1722, 7
          %s1724 = scalar_select %p1723, %s1722, 7
          %s1725 = smul.addr %s1724, 8
          %s1726 = scalar_lea.vmem %s7, %s1725
        $region68: #{actor_forward.1} parent=63 // pred_fallthru
          _
      $region64: #{actor_forward.1} parent=5 // pred_fallthru
        _
    $region6: #{actor_forward.1} parent=1 // loop_footer
      %s19 = sadd.s32 1, %s15
    $region7: #{actor_forward.1} parent=1 // loop_footer_branch
      %14 = sbr.rel target = $region3
    $region8: #{actor_forward.1} parent=1 // loop_exit
      _
    %1727 = vsyncpa [#allocation3], 1
    %s1728 = scalar_lea.sflag [#allocation3], 1
    %1729 = vsyncpa %s1728, 1
    %1730 = vsyncpa [#allocation5], 1

</llo_original>
